<compile_context>
chip_gen: v5e
topology: v5e:2x2
jax: 0.10.0
libtpu: 0.0.40
codegen_flags: <defaults>
</compile_context>

<pallas_src>
import functools

import jax
import jax.numpy as jnp
from jax.experimental import pallas as pl
from jax.experimental.pallas import tpu as pltpu


def _round_up(v, m):
    return ((v + m - 1) // m) * m


def _tile_for(nh):
    # Tiles sized to stay well under v5e's 16 MiB scoped VMEM and v7x's 64 MiB
    # physical VMEM even with double buffering (A tile <= 512KB bf16).
    if nh >= 512:
        return 512
    if nh >= 128:
        return 256
    return 128


# ----------------------------------------------------------------------------
# Layer 1 kernel:   HW2[i] = PReLU( sum_k A1[i,k] @ XW1[k] + b1 ) @ W2
# Grid: (row_tiles, k_tiles); k (reduction) last, "arbitrary".
# ----------------------------------------------------------------------------
def _layer1_kernel(a_ref, xw_ref, b1_ref, al1_ref, w2_ref, o_ref, acc_ref):
    k = pl.program_id(1)

    @pl.when(k == 0)
    def _():
        acc_ref[...] = jnp.zeros_like(acc_ref)

    acc_ref[...] += jnp.dot(a_ref[...], xw_ref[...],
                            preferred_element_type=jnp.float32)

    @pl.when(k == pl.num_programs(1) - 1)
    def _():
        h = acc_ref[...] + b1_ref[...]                       # f32 bias
        h = jnp.where(h >= 0.0, h, al1_ref[...] * h)         # f32 PReLU
        # Fuse conv2's linear transform (row-wise, exact) into the epilogue.
        hw = jnp.dot(h.astype(jnp.bfloat16), w2_ref[...],
                     preferred_element_type=jnp.float32)
        o_ref[...] = hw.astype(o_ref.dtype)


# ----------------------------------------------------------------------------
# Layer 2 kernel + fused split-average:
#   top[i] = PReLU( sum_k A2[i,k]        @ HW2[k] + b2 )
#   bot[i] = PReLU( sum_k A2[i+half,k]   @ HW2[k] + b2 )
#   out[i] = 0.5 * (top[i] + bot[i])
# ----------------------------------------------------------------------------
def _layer2_kernel(a_top_ref, a_bot_ref, hw_ref, b2_ref, al2_ref, o_ref,
                   acc_t_ref, acc_b_ref):
    k = pl.program_id(1)

    @pl.when(k == 0)
    def _():
        acc_t_ref[...] = jnp.zeros_like(acc_t_ref)
        acc_b_ref[...] = jnp.zeros_like(acc_b_ref)

    hw = hw_ref[...]
    acc_t_ref[...] += jnp.dot(a_top_ref[...], hw,
                              preferred_element_type=jnp.float32)
    acc_b_ref[...] += jnp.dot(a_bot_ref[...], hw,
                              preferred_element_type=jnp.float32)

    @pl.when(k == pl.num_programs(1) - 1)
    def _():
        ht = acc_t_ref[...] + b2_ref[...]
        ht = jnp.where(ht >= 0.0, ht, al2_ref[...] * ht)
        hb = acc_b_ref[...] + b2_ref[...]
        hb = jnp.where(hb >= 0.0, hb, al2_ref[...] * hb)
        o_ref[...] = ((ht + hb) * 0.5).astype(o_ref.dtype)


# ----------------------------------------------------------------------------
# Plain-JAX glue: GCN normalization (self-loops + symmetric degree norm),
# producing a dense message-passing matrix M such that out = M @ x_lin.
# Optional node_map scatters nodes into a padded row layout.
# ----------------------------------------------------------------------------
def gcn_norm_dense(edge_index, edge_weight, num_nodes, node_map=None,
                   padded_size=None):
    row = edge_index[0]
    col = edge_index[1]
    loop = jnp.arange(num_nodes, dtype=edge_index.dtype)
    row = jnp.concatenate([row, loop])
    col = jnp.concatenate([col, loop])
    w = jnp.concatenate([edge_weight.astype(jnp.float32),
                         jnp.ones((num_nodes,), dtype=jnp.float32)])
    if node_map is not None:
        row = node_map[row]
        col = node_map[col]
        size = padded_size
    else:
        size = num_nodes
    deg = jnp.zeros((size,), dtype=jnp.float32).at[col].add(w)
    deg_inv_sqrt = jnp.where(deg > 0.0, deg, 1.0) ** -0.5   # no inf intermediates
    norm = deg_inv_sqrt[row] * w * deg_inv_sqrt[col]
    # out[dst] = sum_e norm_e * x[src]  ->  M[dst, src] += norm_e
    return jnp.zeros((size, size), dtype=jnp.float32).at[col, row].add(norm)


# ----------------------------------------------------------------------------
# Wrapper: padding, adjacency construction, two tiled pallas_calls.
# ----------------------------------------------------------------------------
@functools.partial(jax.jit, static_argnames=("tile",))
def double_layered_encoder(x, edge_index, edge_weight, edge_type, params,
                           tile=None):
    w1, b1, al1, w2, b2, al2 = params
    n, cin = x.shape
    c1 = w1.shape[1]          # 2 * hidden
    c_out = w2.shape[1]       # hidden
    nh = n // 2               # module requires an even node count

    t = tile if tile is not None else _tile_for(nh)
    nh_pad = _round_up(max(nh, 1), t)
    n_pad = 2 * nh_pad
    c1p = _round_up(c1, 128)
    c2p = _round_up(c_out, 128)

    # Node layout: first half -> rows [0, nh), second half -> [nh_pad, nh_pad+nh).
    idx = jnp.arange(n, dtype=edge_index.dtype)
    node_map = jnp.where(idx < nh, idx, idx - nh + nh_pad)

    a1 = gcn_norm_dense(edge_index, edge_weight, n,
                        node_map, n_pad).astype(jnp.bfloat16)
    a2 = gcn_norm_dense(edge_index, edge_type.astype(jnp.float32), n,
                        node_map, n_pad).astype(jnp.bfloat16)

    # Lane-pad parameters to 128-wide channels.
    w1p = jnp.zeros((cin, c1p), jnp.float32).at[:, :c1].set(w1)
    b1p = jnp.zeros((1, c1p), jnp.float32).at[0, :c1].set(b1)
    al1p = jnp.zeros((1, c1p), jnp.float32).at[0, :c1].set(al1)
    w2p = jnp.zeros((c1p, c2p), jnp.float32).at[:c1, :c_out].set(w2)
    w2p = w2p.astype(jnp.bfloat16)
    b2p = jnp.zeros((1, c2p), jnp.float32).at[0, :c_out].set(b2)
    al2p = jnp.zeros((1, c2p), jnp.float32).at[0, :c_out].set(al2)

    # Hoist conv1's linear transform (tiny) out of the tile loop: XW1 = X @ W1.
    x_pad = jnp.zeros((n_pad, cin), jnp.float32).at[node_map].set(
        x.astype(jnp.float32))
    xw1 = jnp.dot(x_pad, w1p).astype(jnp.bfloat16)          # [n_pad, c1p]

    row_blocks = n_pad // t
    k_blocks = n_pad // t
    half_blocks = nh_pad // t

    # ---- layer 1 (+ fused h @ W2) --------------------------------------
    hw2 = pl.pallas_call(
        _layer1_kernel,
        out_shape=jax.ShapeDtypeStruct((n_pad, c2p), jnp.bfloat16),
        grid=(row_blocks, k_blocks),
        in_specs=[
            pl.BlockSpec((t, t), lambda i, k: (i, k)),       # A1 tile (bf16)
            pl.BlockSpec((t, c1p), lambda i, k: (k, 0)),     # XW1 tile (bf16)
            pl.BlockSpec((1, c1p), lambda i, k: (0, 0)),     # b1 (f32)
            pl.BlockSpec((1, c1p), lambda i, k: (0, 0)),     # alpha1 (f32)
            pl.BlockSpec((c1p, c2p), lambda i, k: (0, 0)),   # W2 (bf16)
        ],
        out_specs=pl.BlockSpec((t, c2p), lambda i, k: (i, 0)),
        scratch_shapes=[pltpu.VMEM((t, c1p), jnp.float32)],
        compiler_params=pltpu.CompilerParams(
            dimension_semantics=("parallel", "arbitrary")),
    )(a1, xw1, b1p, al1p, w2p)

    # ---- layer 2 + fused half-average ----------------------------------
    out_pad = pl.pallas_call(
        _layer2_kernel,
        out_shape=jax.ShapeDtypeStruct((nh_pad, c2p), jnp.float32),
        grid=(half_blocks, k_blocks),
        in_specs=[
            pl.BlockSpec((t, t), lambda i, k: (i, k)),                       # A2 top half rows
            pl.BlockSpec((t, t), lambda i, k, hb=half_blocks: (i + hb, k)),  # A2 bottom half rows
            pl.BlockSpec((t, c2p), lambda i, k: (k, 0)),                     # HW2 tile (bf16)
            pl.BlockSpec((1, c2p), lambda i, k: (0, 0)),                     # b2
            pl.BlockSpec((1, c2p), lambda i, k: (0, 0)),                     # alpha2
        ],
        out_specs=pl.BlockSpec((t, c2p), lambda i, k: (i, 0)),
        scratch_shapes=[pltpu.VMEM((t, c2p), jnp.float32),
                        pltpu.VMEM((t, c2p), jnp.float32)],
        compiler_params=pltpu.CompilerParams(
            dimension_semantics=("parallel", "arbitrary")),
    )(a2, a2, hw2, b2p, al2p)

    return out_pad[:nh, :c_out]


def init_params(key, in_channels, hidden_channels):
    two_h = 2 * hidden_channels
    k1, k2 = jax.random.split(key)
    s1 = (6.0 / (in_channels + two_h)) ** 0.5
    s2 = (6.0 / (two_h + hidden_channels)) ** 0.5
    w1 = jax.random.uniform(k1, (in_channels, two_h), jnp.float32, -s1, s1)
    w2 = jax.random.uniform(k2, (two_h, hidden_channels), jnp.float32, -s2, s2)
    b1 = jnp.zeros((two_h,), jnp.float32)             # GCNConv bias init: zeros
    b2 = jnp.zeros((hidden_channels,), jnp.float32)
    al1 = jnp.full((two_h,), 0.25, jnp.float32)       # PReLU default slope
    al2 = jnp.full((hidden_channels,), 0.25, jnp.float32)
    return (w1, b1, al1, w2, b2, al2)


# Pure-JAX (f32, unpadded) reference for validation.
def _reference(x, edge_index, edge_weight, edge_type, params):
    w1, b1, al1, w2, b2, al2 = params
    n = x.shape[0]
    a1 = gcn_norm_dense(edge_index, edge_weight, n)
    a2 = gcn_norm_dense(edge_index, edge_type.astype(jnp.float32), n)
    h = a1 @ (x @ w1) + b1
    h = jnp.where(h >= 0.0, h, al1 * h)
    h2 = a2 @ (h @ w2) + b2
    h2 = jnp.where(h2 >= 0.0, h2, al2 * h2)
    nh = n // 2
    return (h2[:nh] + h2[nh:]) * 0.5


if __name__ == "__main__":
    key = jax.random.PRNGKey(0)
    k_feat, k_src, k_dst, k_w, k_t, k_param = jax.random.split(key, 6)

    N = 16                 # number of nodes (even -> two halves of 8)
    IN_CHANNELS = 8
    HIDDEN = 16
    E = 40                 # number of edges

    x = jax.random.normal(k_feat, (N, IN_CHANNELS), jnp.float32)
    src = jax.random.randint(k_src, (E,), 0, N, dtype=jnp.int32)
    dst = jax.random.randint(k_dst, (E,), 0, N, dtype=jnp.int32)
    edge_index = jnp.stack([src, dst], axis=0)                        # [2, E]
    edge_weight = jax.random.uniform(k_w, (E,), jnp.float32, 0.1, 1.0)
    edge_type = jax.random.randint(k_t, (E,), 1, 4, dtype=jnp.int32)  # used as .float()

    params = init_params(k_param, IN_CHANNELS, HIDDEN)

    out = double_layered_encoder(x, edge_index, edge_weight, edge_type, params)
    out = jax.block_until_ready(out)

    assert out.shape == (N // 2, HIDDEN), out.shape
    assert jnp.all(jnp.isfinite(out))

    ref = _reference(x, edge_index, edge_weight, edge_type, params)
    rel_err = float(jnp.linalg.norm(out - ref) /
                    jnp.maximum(jnp.linalg.norm(ref), 1e-6))
    assert rel_err < 5e-2, f"relative error too high: {rel_err}"

    print("KERNEL_OK")
</pallas_src>

<mosaic_0001>
module attributes {stable_mosaic.version = 11 : i64} {
  func.func @_layer1_kernel(%arg0: i32, %arg1: i32, %arg2: memref<128x128xbf16, #tpu.memory_space<vmem>>, %arg3: memref<128x128xbf16, #tpu.memory_space<vmem>>, %arg4: memref<1x128xf32, #tpu.memory_space<vmem>>, %arg5: memref<1x128xf32, #tpu.memory_space<vmem>>, %arg6: memref<128x128xbf16, #tpu.memory_space<vmem>>, %arg7: memref<128x128xbf16, #tpu.memory_space<vmem>>, %arg8: memref<128x128xf32, #tpu.memory_space<vmem>>) attributes {dimension_semantics = [#tpu.dimension_semantics<parallel>, #tpu.dimension_semantics<arbitrary>], iteration_bounds = array<i64: 2, 2>, scalar_prefetch = 0 : i64, scratch_operands = 1 : i64, tpu.core_type = #tpu.core_type<tc>, window_params = [{transform_indices = @transform_0, window_bounds = array<i64: 128, 128>}, {transform_indices = @transform_1, window_bounds = array<i64: 128, 128>}, {pipeline_mode = #tpu.pipeline_mode<synchronous>, transform_indices = @transform_2, window_bounds = array<i64: 1, 128>}, {pipeline_mode = #tpu.pipeline_mode<synchronous>, transform_indices = @transform_3, window_bounds = array<i64: 1, 128>}, {pipeline_mode = #tpu.pipeline_mode<synchronous>, transform_indices = @transform_4, window_bounds = array<i64: 128, 128>}, {transform_indices = @transform_5, window_bounds = array<i64: 128, 128>}]} {
    %c0_i32 = arith.constant 0 : i32
    %0 = arith.cmpi eq, %arg1, %c0_i32 : i32
    %1 = arith.extui %0 : i1 to i32
    %c0_i32_0 = arith.constant 0 : i32
    %2 = arith.cmpi ne, %1, %c0_i32_0 : i32
    scf.if %2 {
      %cst_9 = arith.constant 0.000000e+00 : f32
      %12 = vector.broadcast %cst_9 : f32 to vector<128x128xf32>
      %c0_10 = arith.constant 0 : index
      %c0_11 = arith.constant 0 : index
      %13 = vector.load %arg8[%c0_10, %c0_11] : memref<128x128xf32, #tpu.memory_space<vmem>>, vector<128x128xf32>
      tpu.vector_store %arg8[%c0_10, %c0_11], %12 {strides = array<i32>} : memref<128x128xf32, #tpu.memory_space<vmem>>, vector<128x128xf32>,
    } else {
    }
    %c0 = arith.constant 0 : index
    %c0_1 = arith.constant 0 : index
    %3 = vector.load %arg8[%c0, %c0_1] : memref<128x128xf32, #tpu.memory_space<vmem>>, vector<128x128xf32>
    %c0_2 = arith.constant 0 : index
    %c0_3 = arith.constant 0 : index
    %4 = vector.load %arg2[%c0_2, %c0_3] : memref<128x128xbf16, #tpu.memory_space<vmem>>, vector<128x128xbf16>
    %c0_4 = arith.constant 0 : index
    %c0_5 = arith.constant 0 : index
    %5 = vector.load %arg3[%c0_4, %c0_5] : memref<128x128xbf16, #tpu.memory_space<vmem>>, vector<128x128xbf16>
    %cst = arith.constant dense<0.000000e+00> : vector<128x128xf32>
    %6 = tpu.matmul %4, %5, %cst {dimension_numbers = #tpu.dot_dimension_numbers<[1], [0], [0], [1], [0, 0, 1, 1], [], []>} : vector<128x128xbf16>, vector<128x128xbf16>, vector<128x128xf32> -> vector<128x128xf32>
    %7 = arith.addf %3, %6 : vector<128x128xf32>
    %c0_6 = arith.constant 0 : index
    %c0_7 = arith.constant 0 : index
    %8 = vector.load %arg8[%c0_6, %c0_7] : memref<128x128xf32, #tpu.memory_space<vmem>>, vector<128x128xf32>
    tpu.vector_store %arg8[%c0_6, %c0_7], %7 {strides = array<i32>} : memref<128x128xf32, #tpu.memory_space<vmem>>, vector<128x128xf32>,
    %c1_i32 = arith.constant 1 : i32
    %9 = arith.cmpi eq, %arg1, %c1_i32 : i32
    %10 = arith.extui %9 : i1 to i32
    %c0_i32_8 = arith.constant 0 : i32
    %11 = arith.cmpi ne, %10, %c0_i32_8 : i32
    scf.if %11 {
      %c0_9 = arith.constant 0 : index
      %c0_10 = arith.constant 0 : index
      %12 = vector.load %arg8[%c0_9, %c0_10] : memref<128x128xf32, #tpu.memory_space<vmem>>, vector<128x128xf32>
      %c0_11 = arith.constant 0 : index
      %c0_12 = arith.constant 0 : index
      %13 = vector.load %arg4[%c0_11, %c0_12] : memref<1x128xf32, #tpu.memory_space<vmem>>, vector<1x128xf32>
      %14 = vector.broadcast %13 : vector<1x128xf32> to vector<128x128xf32>
      %15 = arith.addf %12, %14 : vector<128x128xf32>
      %cst_13 = arith.constant 0.000000e+00 : f32
      %16 = vector.broadcast %cst_13 : f32 to vector<128x128xf32>
      %17 = arith.cmpf oge, %15, %16 : vector<128x128xf32>
      %c0_14 = arith.constant 0 : index
      %c0_15 = arith.constant 0 : index
      %18 = vector.load %arg5[%c0_14, %c0_15] : memref<1x128xf32, #tpu.memory_space<vmem>>, vector<1x128xf32>
      %19 = vector.broadcast %18 : vector<1x128xf32> to vector<128x128xf32>
      %20 = arith.mulf %19, %15 : vector<128x128xf32>
      %21 = arith.select %17, %15, %20 : vector<128x128xi1>, vector<128x128xf32>
      %22 = arith.truncf %21 : vector<128x128xf32> to vector<128x128xbf16>
      %c0_16 = arith.constant 0 : index
      %c0_17 = arith.constant 0 : index
      %23 = vector.load %arg6[%c0_16, %c0_17] : memref<128x128xbf16, #tpu.memory_space<vmem>>, vector<128x128xbf16>
      %cst_18 = arith.constant dense<0.000000e+00> : vector<128x128xf32>
      %24 = tpu.matmul %22, %23, %cst_18 {dimension_numbers = #tpu.dot_dimension_numbers<[1], [0], [0], [1], [0, 0, 1, 1], [], []>} : vector<128x128xbf16>, vector<128x128xbf16>, vector<128x128xf32> -> vector<128x128xf32>
      %25 = arith.truncf %24 : vector<128x128xf32> to vector<128x128xbf16>
      %c0_19 = arith.constant 0 : index
      %c0_20 = arith.constant 0 : index
      %26 = vector.load %arg7[%c0_19, %c0_20] : memref<128x128xbf16, #tpu.memory_space<vmem>>, vector<128x128xbf16>
      tpu.vector_store %arg7[%c0_19, %c0_20], %25 {strides = array<i32>} : memref<128x128xbf16, #tpu.memory_space<vmem>>, vector<128x128xbf16>,
    } else {
    }
    return
  }
  func.func @transform_0(%arg0: i32, %arg1: i32) -> (i32, i32) {
    %c0_i32 = arith.constant 0 : i32
    return %arg0, %arg1 : i32, i32
  }
  func.func @transform_1(%arg0: i32, %arg1: i32) -> (i32, i32) {
    %c0_i32 = arith.constant 0 : i32
    %c0_i32_0 = arith.constant 0 : i32
    return %arg1, %c0_i32 : i32, i32
  }
  func.func @transform_2(%arg0: i32, %arg1: i32) -> (i32, i32) {
    %c0_i32 = arith.constant 0 : i32
    %c0_i32_0 = arith.constant 0 : i32
    %c0_i32_1 = arith.constant 0 : i32
    return %c0_i32, %c0_i32_0 : i32, i32
  }
  func.func @transform_3(%arg0: i32, %arg1: i32) -> (i32, i32) {
    %c0_i32 = arith.constant 0 : i32
    %c0_i32_0 = arith.constant 0 : i32
    %c0_i32_1 = arith.constant 0 : i32
    return %c0_i32, %c0_i32_0 : i32, i32
  }
  func.func @transform_4(%arg0: i32, %arg1: i32) -> (i32, i32) {
    %c0_i32 = arith.constant 0 : i32
    %c0_i32_0 = arith.constant 0 : i32
    %c0_i32_1 = arith.constant 0 : i32
    return %c0_i32, %c0_i32_0 : i32, i32
  }
  func.func @transform_5(%arg0: i32, %arg1: i32) -> (i32, i32) {
    %c0_i32 = arith.constant 0 : i32
    %c0_i32_0 = arith.constant 0 : i32
    return %arg0, %c0_i32 : i32, i32
  }
}

module attributes {stable_mosaic.version = 11 : i64} {
  func.func @_layer2_kernel(%arg0: i32, %arg1: i32, %arg2: memref<128x128xbf16, #tpu.memory_space<vmem>>, %arg3: memref<128x128xbf16, #tpu.memory_space<vmem>>, %arg4: memref<128x128xbf16, #tpu.memory_space<vmem>>, %arg5: memref<1x128xf32, #tpu.memory_space<vmem>>, %arg6: memref<1x128xf32, #tpu.memory_space<vmem>>, %arg7: memref<128x128xf32, #tpu.memory_space<vmem>>, %arg8: memref<128x128xf32, #tpu.memory_space<vmem>>, %arg9: memref<128x128xf32, #tpu.memory_space<vmem>>) attributes {dimension_semantics = [#tpu.dimension_semantics<parallel>, #tpu.dimension_semantics<arbitrary>], iteration_bounds = array<i64: 1, 2>, scalar_prefetch = 0 : i64, scratch_operands = 2 : i64, tpu.core_type = #tpu.core_type<tc>, window_params = [{transform_indices = @transform_0, window_bounds = array<i64: 128, 128>}, {transform_indices = @transform_1, window_bounds = array<i64: 128, 128>}, {transform_indices = @transform_2, window_bounds = array<i64: 128, 128>}, {pipeline_mode = #tpu.pipeline_mode<synchronous>, transform_indices = @transform_3, window_bounds = array<i64: 1, 128>}, {pipeline_mode = #tpu.pipeline_mode<synchronous>, transform_indices = @transform_4, window_bounds = array<i64: 1, 128>}, {transform_indices = @transform_5, window_bounds = array<i64: 128, 128>}]} {
    %c0_i32 = arith.constant 0 : i32
    %0 = arith.cmpi eq, %arg1, %c0_i32 : i32
    %1 = arith.extui %0 : i1 to i32
    %c0_i32_0 = arith.constant 0 : i32
    %2 = arith.cmpi ne, %1, %c0_i32_0 : i32
    scf.if %2 {
      %cst_16 = arith.constant 0.000000e+00 : f32
      %17 = vector.broadcast %cst_16 : f32 to vector<128x128xf32>
      %c0_17 = arith.constant 0 : index
      %c0_18 = arith.constant 0 : index
      %18 = vector.load %arg8[%c0_17, %c0_18] : memref<128x128xf32, #tpu.memory_space<vmem>>, vector<128x128xf32>
      tpu.vector_store %arg8[%c0_17, %c0_18], %17 {strides = array<i32>} : memref<128x128xf32, #tpu.memory_space<vmem>>, vector<128x128xf32>,
      %cst_19 = arith.constant 0.000000e+00 : f32
      %19 = vector.broadcast %cst_19 : f32 to vector<128x128xf32>
      %c0_20 = arith.constant 0 : index
      %c0_21 = arith.constant 0 : index
      %20 = vector.load %arg9[%c0_20, %c0_21] : memref<128x128xf32, #tpu.memory_space<vmem>>, vector<128x128xf32>
      tpu.vector_store %arg9[%c0_20, %c0_21], %19 {strides = array<i32>} : memref<128x128xf32, #tpu.memory_space<vmem>>, vector<128x128xf32>,
    } else {
    }
    %c0 = arith.constant 0 : index
    %c0_1 = arith.constant 0 : index
    %3 = vector.load %arg4[%c0, %c0_1] : memref<128x128xbf16, #tpu.memory_space<vmem>>, vector<128x128xbf16>
    %c0_2 = arith.constant 0 : index
    %c0_3 = arith.constant 0 : index
    %4 = vector.load %arg8[%c0_2, %c0_3] : memref<128x128xf32, #tpu.memory_space<vmem>>, vector<128x128xf32>
    %c0_4 = arith.constant 0 : index
    %c0_5 = arith.constant 0 : index
    %5 = vector.load %arg2[%c0_4, %c0_5] : memref<128x128xbf16, #tpu.memory_space<vmem>>, vector<128x128xbf16>
    %cst = arith.constant dense<0.000000e+00> : vector<128x128xf32>
    %6 = tpu.matmul %5, %3, %cst {dimension_numbers = #tpu.dot_dimension_numbers<[1], [0], [0], [1], [0, 0, 1, 1], [], []>} : vector<128x128xbf16>, vector<128x128xbf16>, vector<128x128xf32> -> vector<128x128xf32>
    %7 = arith.addf %4, %6 : vector<128x128xf32>
    %c0_6 = arith.constant 0 : index
    %c0_7 = arith.constant 0 : index
    %8 = vector.load %arg8[%c0_6, %c0_7] : memref<128x128xf32, #tpu.memory_space<vmem>>, vector<128x128xf32>
    tpu.vector_store %arg8[%c0_6, %c0_7], %7 {strides = array<i32>} : memref<128x128xf32, #tpu.memory_space<vmem>>, vector<128x128xf32>,
    %c0_8 = arith.constant 0 : index
    %c0_9 = arith.constant 0 : index
    %9 = vector.load %arg9[%c0_8, %c0_9] : memref<128x128xf32, #tpu.memory_space<vmem>>, vector<128x128xf32>
    %c0_10 = arith.constant 0 : index
    %c0_11 = arith.constant 0 : index
    %10 = vector.load %arg3[%c0_10, %c0_11] : memref<128x128xbf16, #tpu.memory_space<vmem>>, vector<128x128xbf16>
    %cst_12 = arith.constant dense<0.000000e+00> : vector<128x128xf32>
    %11 = tpu.matmul %10, %3, %cst_12 {dimension_numbers = #tpu.dot_dimension_numbers<[1], [0], [0], [1], [0, 0, 1, 1], [], []>} : vector<128x128xbf16>, vector<128x128xbf16>, vector<128x128xf32> -> vector<128x128xf32>
    %12 = arith.addf %9, %11 : vector<128x128xf32>
    %c0_13 = arith.constant 0 : index
    %c0_14 = arith.constant 0 : index
    %13 = vector.load %arg9[%c0_13, %c0_14] : memref<128x128xf32, #tpu.memory_space<vmem>>, vector<128x128xf32>
    tpu.vector_store %arg9[%c0_13, %c0_14], %12 {strides = array<i32>} : memref<128x128xf32, #tpu.memory_space<vmem>>, vector<128x128xf32>,
    %c1_i32 = arith.constant 1 : i32
    %14 = arith.cmpi eq, %arg1, %c1_i32 : i32
    %15 = arith.extui %14 : i1 to i32
    %c0_i32_15 = arith.constant 0 : i32
    %16 = arith.cmpi ne, %15, %c0_i32_15 : i32
    scf.if %16 {
      %c0_16 = arith.constant 0 : index
      %c0_17 = arith.constant 0 : index
      %17 = vector.load %arg8[%c0_16, %c0_17] : memref<128x128xf32, #tpu.memory_space<vmem>>, vector<128x128xf32>
      %c0_18 = arith.constant 0 : index
      %c0_19 = arith.constant 0 : index
      %18 = vector.load %arg5[%c0_18, %c0_19] : memref<1x128xf32, #tpu.memory_space<vmem>>, vector<1x128xf32>
      %19 = vector.broadcast %18 : vector<1x128xf32> to vector<128x128xf32>
      %20 = arith.addf %17, %19 : vector<128x128xf32>
      %cst_20 = arith.constant 0.000000e+00 : f32
      %21 = vector.broadcast %cst_20 : f32 to vector<128x128xf32>
      %22 = arith.cmpf oge, %20, %21 : vector<128x128xf32>
      %c0_21 = arith.constant 0 : index
      %c0_22 = arith.constant 0 : index
      %23 = vector.load %arg6[%c0_21, %c0_22] : memref<1x128xf32, #tpu.memory_space<vmem>>, vector<1x128xf32>
      %24 = vector.broadcast %23 : vector<1x128xf32> to vector<128x128xf32>
      %25 = arith.mulf %24, %20 : vector<128x128xf32>
      %26 = arith.select %22, %20, %25 : vector<128x128xi1>, vector<128x128xf32>
      %c0_23 = arith.constant 0 : index
      %c0_24 = arith.constant 0 : index
      %27 = vector.load %arg9[%c0_23, %c0_24] : memref<128x128xf32, #tpu.memory_space<vmem>>, vector<128x128xf32>
      %c0_25 = arith.constant 0 : index
      %c0_26 = arith.constant 0 : index
      %28 = vector.load %arg5[%c0_25, %c0_26] : memref<1x128xf32, #tpu.memory_space<vmem>>, vector<1x128xf32>
      %29 = vector.broadcast %28 : vector<1x128xf32> to vector<128x128xf32>
      %30 = arith.addf %27, %29 : vector<128x128xf32>
      %cst_27 = arith.constant 0.000000e+00 : f32
      %31 = vector.broadcast %cst_27 : f32 to vector<128x128xf32>
      %32 = arith.cmpf oge, %30, %31 : vector<128x128xf32>
      %c0_28 = arith.constant 0 : index
      %c0_29 = arith.constant 0 : index
      %33 = vector.load %arg6[%c0_28, %c0_29] : memref<1x128xf32, #tpu.memory_space<vmem>>, vector<1x128xf32>
      %34 = vector.broadcast %33 : vector<1x128xf32> to vector<128x128xf32>
      %35 = arith.mulf %34, %30 : vector<128x128xf32>
      %36 = arith.select %32, %30, %35 : vector<128x128xi1>, vector<128x128xf32>
      %37 = arith.addf %26, %36 : vector<128x128xf32>
      %cst_30 = arith.constant 5.000000e-01 : f32
      %38 = vector.broadcast %cst_30 : f32 to vector<128x128xf32>
      %39 = arith.mulf %37, %38 : vector<128x128xf32>
      %c0_31 = arith.constant 0 : index
      %c0_32 = arith.constant 0 : index
      %40 = vector.load %arg7[%c0_31, %c0_32] : memref<128x128xf32, #tpu.memory_space<vmem>>, vector<128x128xf32>
      tpu.vector_store %arg7[%c0_31, %c0_32], %39 {strides = array<i32>} : memref<128x128xf32, #tpu.memory_space<vmem>>, vector<128x128xf32>,
    } else {
    }
    return
  }
  func.func @transform_0(%arg0: i32, %arg1: i32) -> (i32, i32) {
    %c0_i32 = arith.constant 0 : i32
    return %arg0, %arg1 : i32, i32
  }
  func.func @transform_1(%arg0: i32, %arg1: i32) -> (i32, i32) {
    %c1_i32 = arith.constant 1 : i32
    %0 = arith.addi %arg0, %c1_i32 : i32
    %c0_i32 = arith.constant 0 : i32
    return %0, %arg1 : i32, i32
  }
  func.func @transform_2(%arg0: i32, %arg1: i32) -> (i32, i32) {
    %c0_i32 = arith.constant 0 : i32
    %c0_i32_0 = arith.constant 0 : i32
    return %arg1, %c0_i32 : i32, i32
  }
  func.func @transform_3(%arg0: i32, %arg1: i32) -> (i32, i32) {
    %c0_i32 = arith.constant 0 : i32
    %c0_i32_0 = arith.constant 0 : i32
    %c0_i32_1 = arith.constant 0 : i32
    return %c0_i32, %c0_i32_0 : i32, i32
  }
  func.func @transform_4(%arg0: i32, %arg1: i32) -> (i32, i32) {
    %c0_i32 = arith.constant 0 : i32
    %c0_i32_0 = arith.constant 0 : i32
    %c0_i32_1 = arith.constant 0 : i32
    return %c0_i32, %c0_i32_0 : i32, i32
  }
  func.func @transform_5(%arg0: i32, %arg1: i32) -> (i32, i32) {
    %c0_i32 = arith.constant 0 : i32
    %c0_i32_0 = arith.constant 0 : i32
    return %arg0, %c0_i32 : i32, i32
  }
}

</mosaic_0001>

<llo_original>
// kernel: double_layered_encoder.2
$region0: #{double_layered_encoder.2}
  #allocation0 [shape = 'u32[]', space=smem, size = 0x4, offset = 0x4, fixed_abs, tag = 'smem constant byte address 0x4 - core index']
  #allocation1 [shape = 'u32[72,128]{1,0:T(1,128)}', space=vmem, size = 0x9000, scoped, tag = 'internal scratch']
  #allocation2 [shape = 'f32[128,128]{1,0:T(8,128)}', space=vmem, size = 0x10000, scoped, tag = 'scratch operand']
  %s0 = inlined_call_operand.vmem [shape: bf16[256,256], index: 0, kind: input, shape index: {}]
  %s1 = inlined_call_operand.vmem [shape: bf16[256,128], index: 1, kind: input, shape index: {}]
  %s2 = inlined_call_operand.vmem [shape: f32[1,128], index: 2, kind: input, shape index: {}]
  %s3 = inlined_call_operand.vmem [shape: f32[1,128], index: 3, kind: input, shape index: {}]
  %s4 = inlined_call_operand.vmem [shape: bf16[128,128], index: 4, kind: input, shape index: {}]
  %s5 = inlined_call_operand.vmem [shape: bf16[256,128], index: 5, kind: output, shape index: {}]
  %s6 = sld [smem:[#allocation0]]
  $region102: #{double_layered_encoder.2} parent=0
    _
  %s8 = ssub.s32 1, %s6
  %s9 = scalar_select 0, %s8, %s6
  $region1: #{double_layered_encoder.2} parent=0
    #allocation3 [shape = 'u8[65536]{0}', space=vmem, size = 0x10000, scoped, tag = 'input window, operand 0']
    loop: start=0, step=1, limit=6
    $region2: #{double_layered_encoder.2} parent=1 // loop_pre_header
      _
    $region3: #{double_layered_encoder.2} parent=1 // loop_header
      %s11 = sphi 0, %s15
      %p12 = scmp.ge.s32.totalorder %s11, 6
      %s18 = sphi 0, %s30
      %s19 = sphi 0, %s26
      %s20 = sphi 0, %s18
      %s21 = sphi 0, %s19
      %s22 = sphi 0, %s20
      %s23 = sphi 0, %s21
      %s35 = sphi 0, %s37
      %s38 = sphi 0, %s35
      %s39 = sphi 0, %s38
      %s55 = sphi 0, %s39
      %s61 = sphi 0, %s63
      %s64 = sphi 0, %s61
      %s65 = sphi 0, %s64
      %s81 = sphi 0, %s65
      %s85 = sphi 0, %s85
      %s87 = sphi 0, %s85
      %s88 = sphi 0, %s87
      %s102 = sphi 0, %s88
      %s106 = sphi 0, %s106
      %s108 = sphi 0, %s106
      %s109 = sphi 0, %s108
      %s123 = sphi 0, %s109
      %s127 = sphi 0, %s127
      %s129 = sphi 0, %s127
      %s130 = sphi 0, %s129
      %s144 = sphi 0, %s130
      %s150 = sphi 0, %s152
      %s153 = sphi 0, %s150
      %s154 = sphi 0, %s153
      %s170 = sphi 0, %s154
    $region4: #{double_layered_encoder.2} parent=1 // loop_header_branch
      %14 = sbr.rel (%p12) target = $region8
    $region5: #{double_layered_encoder.2} parent=1 // loop_body
      %s16 = ssub.s32 %s11, 1
      %s17 = ssub.s32 %s11, 2
      %s24 = sadd.s32 1, %s19
      %p25 = scmp.ge.s32.totalorder %s24, 2
      %s26 = scalar_select %p25, 0, %s24
      %s27 = sadd.s32 1, %s18
      %s28 = scalar_select %p25, %s27, %s18
      %p29 = scmp.ge.s32.totalorder %s28, 2
      %s30 = scalar_select %p29, 0, %s28
      %s31 = ssub.s32 %s18, %s30
      %s32 = ssub.s32 %s19, %s26
      %s33 = sor.u32 %s31, %s32
      %p34 = scmp.eq.s32.totalorder %s33, 0
      %s36 = sadd.s32 %s35, 1
      %s37 = scalar_select %p34, %s35, %s36
      %p40 = pneg %p34
      %p41 = scmp.eq.s32.totalorder %s11, 3
      %p42 = por %p40, %p41
      %p43 = scmp.ne.s32.totalorder %s35, %s38
      %p44 = scmp.eq.s32.totalorder %s11, 0
      %p45 = por %p43, %p44
      %p46 = scmp.ne.s32.totalorder %s35, %s38
      %p47 = scmp.eq.s32.totalorder %s16, 3
      %p48 = por %p46, %p47
      %p49 = scmp.ne.s32.totalorder %s38, %s39
      %p50 = scmp.eq.s32.totalorder %s16, 0
      %p51 = por %p49, %p50
      %p52 = scmp.ne.s32.totalorder %s38, %s39
      %p53 = scmp.eq.s32.totalorder %s17, 3
      %p54 = por %p52, %p53
      %p56 = scmp.ne.s32.totalorder %s39, %s55
      %p57 = scmp.eq.s32.totalorder %s17, 0
      %p58 = por %p56, %p57
      %s59 = ssub.s32 %s19, %s26
      %p60 = scmp.eq.s32.totalorder %s59, 0
      %s62 = sadd.s32 %s61, 1
      %s63 = scalar_select %p60, %s61, %s62
      %p66 = pneg %p60
      %p67 = scmp.eq.s32.totalorder %s11, 3
      %p68 = por %p66, %p67
      %p69 = scmp.ne.s32.totalorder %s61, %s64
      %p70 = scmp.eq.s32.totalorder %s11, 0
      %p71 = por %p69, %p70
      %p72 = scmp.ne.s32.totalorder %s61, %s64
      %p73 = scmp.eq.s32.totalorder %s16, 3
      %p74 = por %p72, %p73
      %p75 = scmp.ne.s32.totalorder %s64, %s65
      %p76 = scmp.eq.s32.totalorder %s16, 0
      %p77 = por %p75, %p76
      %p78 = scmp.ne.s32.totalorder %s64, %s65
      %p79 = scmp.eq.s32.totalorder %s17, 3
      %p80 = por %p78, %p79
      %p82 = scmp.ne.s32.totalorder %s65, %s81
      %p83 = scmp.eq.s32.totalorder %s17, 0
      %p84 = por %p82, %p83
      %s86 = sadd.s32 %s85, 1
      %p89 = scmp.eq.s32.totalorder %s11, 3
      %p90 = scmp.ne.s32.totalorder %s85, %s87
      %p91 = scmp.eq.s32.totalorder %s11, 0
      %p92 = por %p90, %p91
      %p93 = scmp.ne.s32.totalorder %s85, %s87
      %p94 = scmp.eq.s32.totalorder %s16, 3
      %p95 = por %p93, %p94
      %p96 = scmp.ne.s32.totalorder %s87, %s88
      %p97 = scmp.eq.s32.totalorder %s16, 0
      %p98 = por %p96, %p97
      %p99 = scmp.ne.s32.totalorder %s87, %s88
      %p100 = scmp.eq.s32.totalorder %s17, 3
      %p101 = por %p99, %p100
      %p103 = scmp.ne.s32.totalorder %s88, %s102
      %p104 = scmp.eq.s32.totalorder %s17, 0
      %p105 = por %p103, %p104
      %s107 = sadd.s32 %s106, 1
      %p110 = scmp.eq.s32.totalorder %s11, 3
      %p111 = scmp.ne.s32.totalorder %s106, %s108
      %p112 = scmp.eq.s32.totalorder %s11, 0
      %p113 = por %p111, %p112
      %p114 = scmp.ne.s32.totalorder %s106, %s108
      %p115 = scmp.eq.s32.totalorder %s16, 3
      %p116 = por %p114, %p115
      %p117 = scmp.ne.s32.totalorder %s108, %s109
      %p118 = scmp.eq.s32.totalorder %s16, 0
      %p119 = por %p117, %p118
      %p120 = scmp.ne.s32.totalorder %s108, %s109
      %p121 = scmp.eq.s32.totalorder %s17, 3
      %p122 = por %p120, %p121
      %p124 = scmp.ne.s32.totalorder %s109, %s123
      %p125 = scmp.eq.s32.totalorder %s17, 0
      %p126 = por %p124, %p125
      %s128 = sadd.s32 %s127, 1
      %p131 = scmp.eq.s32.totalorder %s11, 3
      %p132 = scmp.ne.s32.totalorder %s127, %s129
      %p133 = scmp.eq.s32.totalorder %s11, 0
      %p134 = por %p132, %p133
      %p135 = scmp.ne.s32.totalorder %s127, %s129
      %p136 = scmp.eq.s32.totalorder %s16, 3
      %p137 = por %p135, %p136
      %p138 = scmp.ne.s32.totalorder %s129, %s130
      %p139 = scmp.eq.s32.totalorder %s16, 0
      %p140 = por %p138, %p139
      %p141 = scmp.ne.s32.totalorder %s129, %s130
      %p142 = scmp.eq.s32.totalorder %s17, 3
      %p143 = por %p141, %p142
      %p145 = scmp.ne.s32.totalorder %s130, %s144
      %p146 = scmp.eq.s32.totalorder %s17, 0
      %p147 = por %p145, %p146
      %s148 = ssub.s32 %s18, %s30
      %p149 = scmp.eq.s32.totalorder %s148, 0
      %s151 = sadd.s32 %s150, 1
      %s152 = scalar_select %p149, %s150, %s151
      %p155 = pneg %p149
      %p156 = scmp.eq.s32.totalorder %s11, 3
      %p157 = por %p155, %p156
      %p158 = scmp.ne.s32.totalorder %s150, %s153
      %p159 = scmp.eq.s32.totalorder %s11, 0
      %p160 = por %p158, %p159
      %p161 = scmp.ne.s32.totalorder %s150, %s153
      %p162 = scmp.eq.s32.totalorder %s16, 3
      %p163 = por %p161, %p162
      %p164 = scmp.ne.s32.totalorder %s153, %s154
      %p165 = scmp.eq.s32.totalorder %s16, 0
      %p166 = por %p164, %p165
      %p167 = scmp.ne.s32.totalorder %s153, %s154
      %p168 = scmp.eq.s32.totalorder %s17, 3
      %p169 = por %p167, %p168
      %p171 = scmp.ne.s32.totalorder %s154, %s170
      %p172 = scmp.eq.s32.totalorder %s17, 0
      %p173 = por %p171, %p172
      %p174 = scmp.le.s32.totalorder 1, %s11
      %p175 = scmp.lt.s32.totalorder %s11, 5
      %p176 = pnand %p174, %p175
      %p177 = pneg %p176
      // Predicated region
      $region9: #{double_layered_encoder.2} parent=5 // pred_check
        _
      $region10: #{double_layered_encoder.2} parent=5 // pred_check_branch
        %179 = sbr.rel (%p176) target = $region12
      $region11: #{double_layered_encoder.2} parent=5 // pred_region
        %s180 = ssub.s32 %s11, 1
        // Predicated region
        $region13: #{double_layered_encoder.2} parent=11 // pred_check
          %p181 = pneg %p98
        $region14: #{double_layered_encoder.2} parent=11 // pred_check_branch
          %183 = sbr.rel (%p181) target = $region16
        $region15: #{double_layered_encoder.2} parent=11 // pred_region
          _
        $region16: #{double_layered_encoder.2} parent=11 // pred_fallthru
          _
        // Predicated region
        $region17: #{double_layered_encoder.2} parent=11 // pred_check
          %p184 = pneg %p119
        $region18: #{double_layered_encoder.2} parent=11 // pred_check_branch
          %186 = sbr.rel (%p184) target = $region20
        $region19: #{double_layered_encoder.2} parent=11 // pred_region
          _
        $region20: #{double_layered_encoder.2} parent=11 // pred_fallthru
          _
        // Predicated region
        $region21: #{double_layered_encoder.2} parent=11 // pred_check
          %p187 = pneg %p140
        $region22: #{double_layered_encoder.2} parent=11 // pred_check_branch
          %189 = sbr.rel (%p187) target = $region24
        $region23: #{double_layered_encoder.2} parent=11 // pred_region
          _
        $region24: #{double_layered_encoder.2} parent=11 // pred_fallthru
          _
      $region12: #{double_layered_encoder.2} parent=5 // pred_fallthru
        _
      %p190 = scmp.lt.s32.totalorder %s11, 4
      // Predicated region
      $region25: #{double_layered_encoder.2} parent=5 // pred_check
        %p191 = pneg %p190
      $region26: #{double_layered_encoder.2} parent=5 // pred_check_branch
        %193 = sbr.rel (%p191) target = $region28
      $region27: #{double_layered_encoder.2} parent=5 // pred_region
        // Predicated region
        $region29: #{double_layered_encoder.2} parent=27 // pred_check
          %p194 = pneg %p45
        $region30: #{double_layered_encoder.2} parent=27 // pred_check_branch
          %196 = sbr.rel (%p194) target = $region32
        $region31: #{double_layered_encoder.2} parent=27 // pred_region
          %s197 = sand.u32 %s35, 1
          %s198 = sand.u32 %s35, 1
          %s199 = smul.addr %s198, 64
          %s200 = scalar_lea.vmem [#allocation3], %s199
          %s201 = smul.u32 16, %s18
          %s202 = smul.addr %s201, 2
          %s203 = sadd.s32 %s19, %s202
          %s204 = smul.addr %s203, 4
          %s205 = scalar_lea.vmem %s0, %s204
          // Predicated region
          $region33: #{double_layered_encoder.2} parent=31 // pred_check
            _
          $region34: #{double_layered_encoder.2} parent=31 // pred_check_branch
            %207 = sbr.rel (0) target = $region36
          $region35: #{double_layered_encoder.2} parent=31 // pred_region
            // Predicated region
            $region37: #{double_layered_encoder.2} parent=35 // pred_check
              _
            $region38: #{double_layered_encoder.2} parent=35 // pred_check_branch
              %209 = sbr.rel target = $region40
            $region39: #{double_layered_encoder.2} parent=35 // pred_region
              // Predicated region
              $region52: #{double_layered_encoder.2} parent=39 // pred_check
                _
              $region53: #{double_layered_encoder.2} parent=39 // pred_check_branch
                %255 = sbr.rel (0) target = $region55
              $region54: #{double_layered_encoder.2} parent=39 // pred_region
                loop: start=0, step=1, limit=1
                $region56: #{double_layered_encoder.2} parent=54 // loop_pre_header
                  _
                $region57: #{double_layered_encoder.2} parent=54 // loop_header
                  %s257 = sphi 0, %s261
                  %p258 = scmp.ge.s32.totalorder %s257, 1
                  %s262 = sphi %s205, %s205
                  %s263 = sphi %s200, %s200
                $region58: #{double_layered_encoder.2} parent=54 // loop_header_branch
                  %260 = sbr.rel (%p258) target = $region62
                $region59: #{double_layered_encoder.2} parent=54 // loop_body
                  _
                $region60: #{double_layered_encoder.2} parent=54 // loop_footer
                  %s261 = sadd.s32 1, %s257
                $region61: #{double_layered_encoder.2} parent=54 // loop_footer_branch
                  %256 = sbr.rel target = $region57
                $region62: #{double_layered_encoder.2} parent=54 // loop_exit
                  _
                %s265 = ssub.s32 16, 1
                loop: start=0, step=1, limit=1
                $region63: #{double_layered_encoder.2} parent=54 // loop_pre_header
                  _
                $region64: #{double_layered_encoder.2} parent=54 // loop_header
                  %s267 = sphi 0, %s271
                  %p268 = scmp.ge.s32.totalorder %s267, 1
                  %s272 = sphi %s205, %s205
                  %s273 = sphi %s200, %s200
                $region65: #{double_layered_encoder.2} parent=54 // loop_header_branch
                  %270 = sbr.rel (%p268) target = $region69
                $region66: #{double_layered_encoder.2} parent=54 // loop_body
                  %v274 = vld [vmem:[%s272] sm:%s265]
                  %275 = vst [vmem:[%s273] sm:%s265] %v274
                  %v276 = vld [vmem:[%s272 + $0x8] sm:%s265]
                  %277 = vst [vmem:[%s273 + $0x4] sm:%s265] %v276
                  %v278 = vld [vmem:[%s272 + $0x10] sm:%s265]
                  %279 = vst [vmem:[%s273 + $0x8] sm:%s265] %v278
                  %v280 = vld [vmem:[%s272 + $0x18] sm:%s265]
                  %281 = vst [vmem:[%s273 + $0xc] sm:%s265] %v280
                  %v282 = vld [vmem:[%s272 + $0x20] sm:%s265]
                  %283 = vst [vmem:[%s273 + $0x10] sm:%s265] %v282
                  %v284 = vld [vmem:[%s272 + $0x28] sm:%s265]
                  %285 = vst [vmem:[%s273 + $0x14] sm:%s265] %v284
                  %v286 = vld [vmem:[%s272 + $0x30] sm:%s265]
                  %287 = vst [vmem:[%s273 + $0x18] sm:%s265] %v286
                  %v288 = vld [vmem:[%s272 + $0x38] sm:%s265]
                  %289 = vst [vmem:[%s273 + $0x1c] sm:%s265] %v288
                  %v290 = vld [vmem:[%s272 + $0x40] sm:%s265]
                  %291 = vst [vmem:[%s273 + $0x20] sm:%s265] %v290
                  %v292 = vld [vmem:[%s272 + $0x48] sm:%s265]
                  %293 = vst [vmem:[%s273 + $0x24] sm:%s265] %v292
                  %v294 = vld [vmem:[%s272 + $0x50] sm:%s265]
                  %295 = vst [vmem:[%s273 + $0x28] sm:%s265] %v294
                  %v296 = vld [vmem:[%s272 + $0x58] sm:%s265]
                  %297 = vst [vmem:[%s273 + $0x2c] sm:%s265] %v296
                  %v298 = vld [vmem:[%s272 + $0x60] sm:%s265]
                  %299 = vst [vmem:[%s273 + $0x30] sm:%s265] %v298
                  %v300 = vld [vmem:[%s272 + $0x68] sm:%s265]
                  %301 = vst [vmem:[%s273 + $0x34] sm:%s265] %v300
                  %v302 = vld [vmem:[%s272 + $0x70] sm:%s265]
                  %303 = vst [vmem:[%s273 + $0x38] sm:%s265] %v302
                  %v304 = vld [vmem:[%s272 + $0x78] sm:%s265]
                  %305 = vst [vmem:[%s273 + $0x3c] sm:%s265] %v304
                $region67: #{double_layered_encoder.2} parent=54 // loop_footer
                  %s271 = sadd.s32 1, %s267
                $region68: #{double_layered_encoder.2} parent=54 // loop_footer_branch
                  %266 = sbr.rel target = $region64
                $region69: #{double_layered_encoder.2} parent=54 // loop_exit
                  _
              $region55: #{double_layered_encoder.2} parent=39 // pred_fallthru
                _
            $region40: #{double_layered_encoder.2} parent=35 // pred_fallthru
              _
            // Predicated region
            $region41: #{double_layered_encoder.2} parent=35 // pred_check
              _
            $region42: #{double_layered_encoder.2} parent=35 // pred_check_branch
              %211 = sbr.rel (0) target = $region44
            $region43: #{double_layered_encoder.2} parent=35 // pred_region
              %s213 = ssub.s32 16, 1
              loop: start=0, step=1, limit=1
              $region45: #{double_layered_encoder.2} parent=43 // loop_pre_header
                _
              $region46: #{double_layered_encoder.2} parent=43 // loop_header
                %s215 = sphi 0, %s219
                %p216 = scmp.ge.s32.totalorder %s215, 1
                %s220 = sphi %s205, %s205
                %s221 = sphi %s200, %s200
              $region47: #{double_layered_encoder.2} parent=43 // loop_header_branch
                %218 = sbr.rel (%p216) target = $region51
              $region48: #{double_layered_encoder.2} parent=43 // loop_body
                %v222 = vld [vmem:[%s220] sm:%s213]
                %223 = vst [vmem:[%s221] sm:%s213] %v222
                %v224 = vld [vmem:[%s220 + $0x8] sm:%s213]
                %225 = vst [vmem:[%s221 + $0x4] sm:%s213] %v224
                %v226 = vld [vmem:[%s220 + $0x10] sm:%s213]
                %227 = vst [vmem:[%s221 + $0x8] sm:%s213] %v226
                %v228 = vld [vmem:[%s220 + $0x18] sm:%s213]
                %229 = vst [vmem:[%s221 + $0xc] sm:%s213] %v228
                %v230 = vld [vmem:[%s220 + $0x20] sm:%s213]
                %231 = vst [vmem:[%s221 + $0x10] sm:%s213] %v230
                %v232 = vld [vmem:[%s220 + $0x28] sm:%s213]
                %233 = vst [vmem:[%s221 + $0x14] sm:%s213] %v232
                %v234 = vld [vmem:[%s220 + $0x30] sm:%s213]
                %235 = vst [vmem:[%s221 + $0x18] sm:%s213] %v234
                %v236 = vld [vmem:[%s220 + $0x38] sm:%s213]
                %237 = vst [vmem:[%s221 + $0x1c] sm:%s213] %v236
                %v238 = vld [vmem:[%s220 + $0x40] sm:%s213]
                %239 = vst [vmem:[%s221 + $0x20] sm:%s213] %v238
                %v240 = vld [vmem:[%s220 + $0x48] sm:%s213]
                %241 = vst [vmem:[%s221 + $0x24] sm:%s213] %v240
                %v242 = vld [vmem:[%s220 + $0x50] sm:%s213]
                %243 = vst [vmem:[%s221 + $0x28] sm:%s213] %v242
                %v244 = vld [vmem:[%s220 + $0x58] sm:%s213]
                %245 = vst [vmem:[%s221 + $0x2c] sm:%s213] %v244
                %v246 = vld [vmem:[%s220 + $0x60] sm:%s213]
                %247 = vst [vmem:[%s221 + $0x30] sm:%s213] %v246
                %v248 = vld [vmem:[%s220 + $0x68] sm:%s213]
                %249 = vst [vmem:[%s221 + $0x34] sm:%s213] %v248
                %v250 = vld [vmem:[%s220 + $0x70] sm:%s213]
                %251 = vst [vmem:[%s221 + $0x38] sm:%s213] %v250
                %v252 = vld [vmem:[%s220 + $0x78] sm:%s213]
                %253 = vst [vmem:[%s221 + $0x3c] sm:%s213] %v252
              $region49: #{double_layered_encoder.2} parent=43 // loop_footer
                %s219 = sadd.s32 1, %s215
              $region50: #{double_layered_encoder.2} parent=43 // loop_footer_branch
                %214 = sbr.rel target = $region46
              $region51: #{double_layered_encoder.2} parent=43 // loop_exit
                _
            $region44: #{double_layered_encoder.2} parent=35 // pred_fallthru
              _
          $region36: #{double_layered_encoder.2} parent=31 // pred_fallthru
            _
          %306 = vnop
        $region32: #{double_layered_encoder.2} parent=27 // pred_fallthru
          _
        // Predicated region
        $region70: #{double_layered_encoder.2} parent=27 // pred_check
          %p307 = pneg %p71
        $region71: #{double_layered_encoder.2} parent=27 // pred_check_branch
          %309 = sbr.rel (%p307) target = $region73
        $region72: #{double_layered_encoder.2} parent=27 // pred_region
          %s310 = smul.u32 16, %s19
          %p311 = scmp.lt.s32.totalorder %s310, 31
          %s312 = scalar_select %p311, %s310, 31
          %s313 = smul.addr %s312, 4
          %s314 = scalar_lea.vmem %s1, %s313
          %s315 = smul.u32 16, %s19
        $region73: #{double_layered_encoder.2} parent=27 // pred_fallthru
          _
      $region28: #{double_layered_encoder.2} parent=5 // pred_fallthru
        _
      %p316 = scmp.le.s32.totalorder 1, %s11
      %p317 = scmp.lt.s32.totalorder %s11, 5
      %p318 = pnand %p316, %p317
      %p319 = pneg %p318
      // Predicated region
      $region74: #{double_layered_encoder.2} parent=5 // pred_check
        _
      $region75: #{double_layered_encoder.2} parent=5 // pred_check_branch
        %321 = sbr.rel (%p318) target = $region77
      $region76: #{double_layered_encoder.2} parent=5 // pred_region
        %s322 = ssub.s32 %s11, 1
        %s323 = sand.u32 %s38, 1
        %s324 = sand.u32 %s38, 1
        %s325 = smul.addr %s324, 64
        %s326 = scalar_lea.vmem [#allocation3], %s325
        // Predicated region
        $region78: #{double_layered_encoder.2} parent=76 // pred_check
          %p327 = pneg %p51
        $region79: #{double_layered_encoder.2} parent=76 // pred_check_branch
          %329 = sbr.rel (%p327) target = $region81
        $region80: #{double_layered_encoder.2} parent=76 // pred_region
          _
        $region81: #{double_layered_encoder.2} parent=76 // pred_fallthru
          _
        %s330 = sand.u32 %s38, 1
        %s331 = sand.u32 %s38, 1
        %s332 = smul.addr %s331, 64
        %s333 = scalar_lea.vmem [#allocation3], %s332
        %p334 = pneg %p51
        %p335 = pneg %p48
        %s336 = smul.u32 16, %s21
        %p337 = scmp.lt.s32.totalorder %s336, 31
        %s338 = scalar_select %p337, %s336, 31
        %s339 = smul.addr %s338, 4
        %s340 = scalar_lea.vmem %s1, %s339
        %p341 = pneg %p77
        %p342 = pneg %p74
        %p343 = pneg %p98
        %p344 = pneg %p95
        %p345 = pneg %p119
        %p346 = pneg %p116
        %p347 = pneg %p140
        %p348 = pneg %p137
        %p349 = pneg %p166
        %p350 = pneg %p163
        %s351 = smul.u32 16, %s20
        %p352 = scmp.lt.s32.totalorder %s351, 31
        %s353 = scalar_select %p352, %s351, 31
        %s354 = smul.addr %s353, 4
        %s355 = scalar_lea.vmem %s5, %s354
        %s356 = smul.u32 16, %s20
        %s357 = smul.u32 16, %s21
        %p358 = scmp.lt.s32.totalorder %s357, 31
        %s359 = scalar_select %p358, %s357, 31
        %s360 = smul.addr %s359, 4
        %s361 = scalar_lea.vmem %s1, %s360
        %s362 = smul.u32 16, %s21
        %s363 = smul.u32 16, %s20
        %p364 = scmp.lt.s32.totalorder %s363, 31
        %s365 = scalar_select %p364, %s363, 31
        %s366 = smul.addr %s365, 4
        %s367 = scalar_lea.vmem %s5, %s366
        %s368 = smul.u32 16, %s20
        %p369 = scmp.eq.s32.totalorder %s21, 0
        // Predicated region
        $region82: #{double_layered_encoder.2} parent=76 // pred_check
          %p370 = pneg %p369
        $region83: #{double_layered_encoder.2} parent=76 // pred_check_branch
          %372 = sbr.rel (%p370) target = $region85
        $region84: #{double_layered_encoder.2} parent=76 // pred_region
          %373 = vst [vmem:[#allocation2] sm:$0xff] 0.0
          %374 = vst [vmem:[#allocation2 + $0x8] sm:$0xff] 0.0
          %375 = vst [vmem:[#allocation2 + $0x10] sm:$0xff] 0.0
          %376 = vst [vmem:[#allocation2 + $0x18] sm:$0xff] 0.0
          %377 = vst [vmem:[#allocation2 + $0x20] sm:$0xff] 0.0
          %378 = vst [vmem:[#allocation2 + $0x28] sm:$0xff] 0.0
          %379 = vst [vmem:[#allocation2 + $0x30] sm:$0xff] 0.0
          %380 = vst [vmem:[#allocation2 + $0x38] sm:$0xff] 0.0
          %381 = vst [vmem:[#allocation2 + $0x40] sm:$0xff] 0.0
          %382 = vst [vmem:[#allocation2 + $0x48] sm:$0xff] 0.0
          %383 = vst [vmem:[#allocation2 + $0x50] sm:$0xff] 0.0
          %384 = vst [vmem:[#allocation2 + $0x58] sm:$0xff] 0.0
          %385 = vst [vmem:[#allocation2 + $0x60] sm:$0xff] 0.0
          %386 = vst [vmem:[#allocation2 + $0x68] sm:$0xff] 0.0
          %387 = vst [vmem:[#allocation2 + $0x70] sm:$0xff] 0.0
          %388 = vst [vmem:[#allocation2 + $0x78] sm:$0xff] 0.0
        $region85: #{double_layered_encoder.2} parent=76 // pred_fallthru
          _
        %v389 = vld [vmem:[#allocation2] sm:$0xff]
        %v390 = vld [vmem:[#allocation2 + $0x8] sm:$0xff]
        %v391 = vld [vmem:[#allocation2 + $0x10] sm:$0xff]
        %v392 = vld [vmem:[#allocation2 + $0x18] sm:$0xff]
        %v393 = vld [vmem:[#allocation2 + $0x20] sm:$0xff]
        %v394 = vld [vmem:[#allocation2 + $0x28] sm:$0xff]
        %v395 = vld [vmem:[#allocation2 + $0x30] sm:$0xff]
        %v396 = vld [vmem:[#allocation2 + $0x38] sm:$0xff]
        %v397 = vld [vmem:[#allocation2 + $0x40] sm:$0xff]
        %v398 = vld [vmem:[#allocation2 + $0x48] sm:$0xff]
        %v399 = vld [vmem:[#allocation2 + $0x50] sm:$0xff]
        %v400 = vld [vmem:[#allocation2 + $0x58] sm:$0xff]
        %v401 = vld [vmem:[#allocation2 + $0x60] sm:$0xff]
        %v402 = vld [vmem:[#allocation2 + $0x68] sm:$0xff]
        %v403 = vld [vmem:[#allocation2 + $0x70] sm:$0xff]
        %v404 = vld [vmem:[#allocation2 + $0x78] sm:$0xff]
        %v405 = vld [vmem:[%s326] sm:$0xf]
        %v406 = vld [vmem:[%s326 + $0x4] sm:$0xf]
        %v407 = vld [vmem:[%s326 + $0x8] sm:$0xf]
        %v408 = vld [vmem:[%s326 + $0xc] sm:$0xf]
        %v409 = vld [vmem:[%s326 + $0x10] sm:$0xf]
        %v410 = vld [vmem:[%s326 + $0x14] sm:$0xf]
        %v411 = vld [vmem:[%s326 + $0x18] sm:$0xf]
        %v412 = vld [vmem:[%s326 + $0x1c] sm:$0xf]
        %v413 = vld [vmem:[%s326 + $0x20] sm:$0xf]
        %v414 = vld [vmem:[%s326 + $0x24] sm:$0xf]
        %v415 = vld [vmem:[%s326 + $0x28] sm:$0xf]
        %v416 = vld [vmem:[%s326 + $0x2c] sm:$0xf]
        %v417 = vld [vmem:[%s326 + $0x30] sm:$0xf]
        %v418 = vld [vmem:[%s326 + $0x34] sm:$0xf]
        %v419 = vld [vmem:[%s326 + $0x38] sm:$0xf]
        %v420 = vld [vmem:[%s326 + $0x3c] sm:$0xf]
        %v421 = vld [vmem:[%s361] sm:$0xf]
        %v422 = vld [vmem:[%s361 + $0x4] sm:$0xf]
        %v423 = vld [vmem:[%s361 + $0x8] sm:$0xf]
        %v424 = vld [vmem:[%s361 + $0xc] sm:$0xf]
        %v425 = vld [vmem:[%s361 + $0x10] sm:$0xf]
        %v426 = vld [vmem:[%s361 + $0x14] sm:$0xf]
        %v427 = vld [vmem:[%s361 + $0x18] sm:$0xf]
        %v428 = vld [vmem:[%s361 + $0x1c] sm:$0xf]
        %v429 = vld [vmem:[%s361 + $0x20] sm:$0xf]
        %v430 = vld [vmem:[%s361 + $0x24] sm:$0xf]
        %v431 = vld [vmem:[%s361 + $0x28] sm:$0xf]
        %v432 = vld [vmem:[%s361 + $0x2c] sm:$0xf]
        %v433 = vld [vmem:[%s361 + $0x30] sm:$0xf]
        %v434 = vld [vmem:[%s361 + $0x34] sm:$0xf]
        %v435 = vld [vmem:[%s361 + $0x38] sm:$0xf]
        %v436 = vld [vmem:[%s361 + $0x3c] sm:$0xf]
        %v453 = vunpack.c.l.b16 %v405
        %v454 = vunpack.c.l.b16 %v406
        %v455 = vunpack.c.l.b16 %v407
        %v456 = vunpack.c.l.b16 %v408
        %v457 = vunpack.c.l.b16 %v409
        %v458 = vunpack.c.l.b16 %v410
        %v459 = vunpack.c.l.b16 %v411
        %v460 = vunpack.c.l.b16 %v412
        %v461 = vunpack.c.l.b16 %v413
        %v462 = vunpack.c.l.b16 %v414
        %v463 = vunpack.c.l.b16 %v415
        %v464 = vunpack.c.l.b16 %v416
        %v465 = vunpack.c.l.b16 %v417
        %v466 = vunpack.c.l.b16 %v418
        %v467 = vunpack.c.l.b16 %v419
        %v468 = vunpack.c.l.b16 %v420
        %v469 = vpack.c.b16 %v454, %v453
        %v470 = vpack.c.b16 %v456, %v455
        %v471 = vpack.c.b16 %v458, %v457
        %v472 = vpack.c.b16 %v460, %v459
        %v473 = vpack.c.b16 %v462, %v461
        %v474 = vpack.c.b16 %v464, %v463
        %v475 = vpack.c.b16 %v466, %v465
        %v476 = vpack.c.b16 %v468, %v467
        %v501 = vunpack.c.l.b16 %v421
        %v502 = vunpack.c.l.b16 %v422
        %v503 = vunpack.c.l.b16 %v423
        %v504 = vunpack.c.l.b16 %v424
        %v505 = vunpack.c.l.b16 %v425
        %v506 = vunpack.c.l.b16 %v426
        %v507 = vunpack.c.l.b16 %v427
        %v508 = vunpack.c.l.b16 %v428
        %v509 = vunpack.c.l.b16 %v429
        %v510 = vunpack.c.l.b16 %v430
        %v511 = vunpack.c.l.b16 %v431
        %v512 = vunpack.c.l.b16 %v432
        %v513 = vunpack.c.l.b16 %v433
        %v514 = vunpack.c.l.b16 %v434
        %v515 = vunpack.c.l.b16 %v435
        %v516 = vunpack.c.l.b16 %v436
        %v517 = vpack.c.b16 %v502, %v501
        %v518 = vpack.c.b16 %v504, %v503
        %v519 = vpack.c.b16 %v506, %v505
        %v520 = vpack.c.b16 %v508, %v507
        %v521 = vpack.c.b16 %v510, %v509
        %v522 = vpack.c.b16 %v512, %v511
        %v523 = vpack.c.b16 %v514, %v513
        %v524 = vpack.c.b16 %v516, %v515
        %533 = vmatpush.bf16.msra.mxu0 %v524
        %534 = vmatpush.bf16.msra.mxu0 %v523
        %535 = vmatpush.bf16.msra.mxu0 %v522
        %536 = vmatpush.bf16.msra.mxu0 %v521
        %537 = vmatpush.bf16.msra.mxu0 %v520
        %538 = vmatpush.bf16.msra.mxu0 %v519
        %539 = vmatpush.bf16.msra.mxu0 %v518
        %540 = vmatpush.bf16.msra.mxu0 %v517
        %541 = vmatmul.bf16.gmra.mxu0 %v469
        %v542 = vpop.f32.mrf.mxu0
        %v543 = vadd.f32 0.0, %v542
        %v544 = vpop.f32.mrf.mxu0
        %v545 = vadd.f32 0.0, %v544
        %546 = vmatmul.bf16.gmra.mxu0 %v470
        %v547 = vpop.f32.mrf.mxu0
        %v548 = vadd.f32 0.0, %v547
        %v549 = vpop.f32.mrf.mxu0
        %v550 = vadd.f32 0.0, %v549
        %551 = vmatmul.bf16.gmra.mxu0 %v471
        %v552 = vpop.f32.mrf.mxu0
        %v553 = vadd.f32 0.0, %v552
        %v554 = vpop.f32.mrf.mxu0
        %v555 = vadd.f32 0.0, %v554
        %556 = vmatmul.bf16.gmra.mxu0 %v472
        %v557 = vpop.f32.mrf.mxu0
        %v558 = vadd.f32 0.0, %v557
        %v559 = vpop.f32.mrf.mxu0
        %v560 = vadd.f32 0.0, %v559
        %561 = vmatmul.bf16.gmra.mxu0 %v473
        %v562 = vpop.f32.mrf.mxu0
        %v563 = vadd.f32 0.0, %v562
        %v564 = vpop.f32.mrf.mxu0
        %v565 = vadd.f32 0.0, %v564
        %566 = vmatmul.bf16.gmra.mxu0 %v474
        %v567 = vpop.f32.mrf.mxu0
        %v568 = vadd.f32 0.0, %v567
        %v569 = vpop.f32.mrf.mxu0
        %v570 = vadd.f32 0.0, %v569
        %571 = vmatmul.bf16.gmra.mxu0 %v475
        %v572 = vpop.f32.mrf.mxu0
        %v573 = vadd.f32 0.0, %v572
        %v574 = vpop.f32.mrf.mxu0
        %v575 = vadd.f32 0.0, %v574
        %576 = vmatmul.bf16.gmra.mxu0 %v476
        %v577 = vpop.f32.mrf.mxu0
        %v578 = vadd.f32 0.0, %v577
        %v579 = vpop.f32.mrf.mxu0
        %v580 = vadd.f32 0.0, %v579
        %581 = vdwg.mxu0
        %v582 = vadd.f32 %v389, %v543
        %v583 = vadd.f32 %v390, %v545
        %v584 = vadd.f32 %v391, %v548
        %v585 = vadd.f32 %v392, %v550
        %v586 = vadd.f32 %v393, %v553
        %v587 = vadd.f32 %v394, %v555
        %v588 = vadd.f32 %v395, %v558
        %v589 = vadd.f32 %v396, %v560
        %v590 = vadd.f32 %v397, %v563
        %v591 = vadd.f32 %v398, %v565
        %v592 = vadd.f32 %v399, %v568
        %v593 = vadd.f32 %v400, %v570
        %v594 = vadd.f32 %v401, %v573
        %v595 = vadd.f32 %v402, %v575
        %v596 = vadd.f32 %v403, %v578
        %v597 = vadd.f32 %v404, %v580
        %598 = vst [vmem:[#allocation2] sm:$0xff] %v582
        %599 = vst [vmem:[#allocation2 + $0x8] sm:$0xff] %v583
        %600 = vst [vmem:[#allocation2 + $0x10] sm:$0xff] %v584
        %601 = vst [vmem:[#allocation2 + $0x18] sm:$0xff] %v585
        %602 = vst [vmem:[#allocation2 + $0x20] sm:$0xff] %v586
        %603 = vst [vmem:[#allocation2 + $0x28] sm:$0xff] %v587
        %604 = vst [vmem:[#allocation2 + $0x30] sm:$0xff] %v588
        %605 = vst [vmem:[#allocation2 + $0x38] sm:$0xff] %v589
        %606 = vst [vmem:[#allocation2 + $0x40] sm:$0xff] %v590
        %607 = vst [vmem:[#allocation2 + $0x48] sm:$0xff] %v591
        %608 = vst [vmem:[#allocation2 + $0x50] sm:$0xff] %v592
        %609 = vst [vmem:[#allocation2 + $0x58] sm:$0xff] %v593
        %610 = vst [vmem:[#allocation2 + $0x60] sm:$0xff] %v594
        %611 = vst [vmem:[#allocation2 + $0x68] sm:$0xff] %v595
        %612 = vst [vmem:[#allocation2 + $0x70] sm:$0xff] %v596
        %613 = vst [vmem:[#allocation2 + $0x78] sm:$0xff] %v597
        %p614 = scmp.eq.s32.totalorder %s21, 1
        // Predicated region
        $region86: #{double_layered_encoder.2} parent=76 // pred_check
          %p615 = pneg %p614
        $region87: #{double_layered_encoder.2} parent=76 // pred_check_branch
          %617 = sbr.rel (%p615) target = $region89
        $region88: #{double_layered_encoder.2} parent=76 // pred_region
          %v618 = vld [vmem:[#allocation2] sm:$0xff]
          %v619 = vld [vmem:[#allocation2 + $0x8] sm:$0xff]
          %v620 = vld [vmem:[#allocation2 + $0x10] sm:$0xff]
          %v621 = vld [vmem:[#allocation2 + $0x18] sm:$0xff]
          %v622 = vld [vmem:[#allocation2 + $0x20] sm:$0xff]
          %v623 = vld [vmem:[#allocation2 + $0x28] sm:$0xff]
          %v624 = vld [vmem:[#allocation2 + $0x30] sm:$0xff]
          %v625 = vld [vmem:[#allocation2 + $0x38] sm:$0xff]
          %v626 = vld [vmem:[#allocation2 + $0x40] sm:$0xff]
          %v627 = vld [vmem:[#allocation2 + $0x48] sm:$0xff]
          %v628 = vld [vmem:[#allocation2 + $0x50] sm:$0xff]
          %v629 = vld [vmem:[#allocation2 + $0x58] sm:$0xff]
          %v630 = vld [vmem:[#allocation2 + $0x60] sm:$0xff]
          %v631 = vld [vmem:[#allocation2 + $0x68] sm:$0xff]
          %v632 = vld [vmem:[#allocation2 + $0x70] sm:$0xff]
          %v633 = vld [vmem:[#allocation2 + $0x78] sm:$0xff]
          %v634 = vld [vmem:[%s2] sm:$0x1]
          %v636 = vperm.slane %v634, 0
          %v638 = vadd.f32 %v618, %v636
          %v639 = vadd.f32 %v619, %v636
          %v640 = vadd.f32 %v620, %v636
          %v641 = vadd.f32 %v621, %v636
          %v642 = vadd.f32 %v622, %v636
          %v643 = vadd.f32 %v623, %v636
          %v644 = vadd.f32 %v624, %v636
          %v645 = vadd.f32 %v625, %v636
          %v646 = vadd.f32 %v626, %v636
          %v647 = vadd.f32 %v627, %v636
          %v648 = vadd.f32 %v628, %v636
          %v649 = vadd.f32 %v629, %v636
          %v650 = vadd.f32 %v630, %v636
          %v651 = vadd.f32 %v631, %v636
          %v652 = vadd.f32 %v632, %v636
          %v653 = vadd.f32 %v633, %v636
          %vm654 = vcmp.ge.f32.partialorder %v638, 0.0
          %vm655 = vcmp.ge.f32.partialorder %v639, 0.0
          %vm656 = vcmp.ge.f32.partialorder %v640, 0.0
          %vm657 = vcmp.ge.f32.partialorder %v641, 0.0
          %vm658 = vcmp.ge.f32.partialorder %v642, 0.0
          %vm659 = vcmp.ge.f32.partialorder %v643, 0.0
          %vm660 = vcmp.ge.f32.partialorder %v644, 0.0
          %vm661 = vcmp.ge.f32.partialorder %v645, 0.0
          %vm662 = vcmp.ge.f32.partialorder %v646, 0.0
          %vm663 = vcmp.ge.f32.partialorder %v647, 0.0
          %vm664 = vcmp.ge.f32.partialorder %v648, 0.0
          %vm665 = vcmp.ge.f32.partialorder %v649, 0.0
          %vm666 = vcmp.ge.f32.partialorder %v650, 0.0
          %vm667 = vcmp.ge.f32.partialorder %v651, 0.0
          %vm668 = vcmp.ge.f32.partialorder %v652, 0.0
          %vm669 = vcmp.ge.f32.partialorder %v653, 0.0
          %v670 = vld [vmem:[%s3] sm:$0x1]
          %v672 = vperm.slane %v670, 0
          %v674 = vmul.f32 %v672, %v638
          %v675 = vmul.f32 %v672, %v639
          %v676 = vmul.f32 %v672, %v640
          %v677 = vmul.f32 %v672, %v641
          %v678 = vmul.f32 %v672, %v642
          %v679 = vmul.f32 %v672, %v643
          %v680 = vmul.f32 %v672, %v644
          %v681 = vmul.f32 %v672, %v645
          %v682 = vmul.f32 %v672, %v646
          %v683 = vmul.f32 %v672, %v647
          %v684 = vmul.f32 %v672, %v648
          %v685 = vmul.f32 %v672, %v649
          %v686 = vmul.f32 %v672, %v650
          %v687 = vmul.f32 %v672, %v651
          %v688 = vmul.f32 %v672, %v652
          %v689 = vmul.f32 %v672, %v653
          %v690 = vsel %vm654, %v638, %v674
          %v691 = vsel %vm655, %v639, %v675
          %v692 = vsel %vm656, %v640, %v676
          %v693 = vsel %vm657, %v641, %v677
          %v694 = vsel %vm658, %v642, %v678
          %v695 = vsel %vm659, %v643, %v679
          %v696 = vsel %vm660, %v644, %v680
          %v697 = vsel %vm661, %v645, %v681
          %v698 = vsel %vm662, %v646, %v682
          %v699 = vsel %vm663, %v647, %v683
          %v700 = vsel %vm664, %v648, %v684
          %v701 = vsel %vm665, %v649, %v685
          %v702 = vsel %vm666, %v650, %v686
          %v703 = vsel %vm667, %v651, %v687
          %v704 = vsel %vm668, %v652, %v688
          %v705 = vsel %vm669, %v653, %v689
          %v706 = vpack.c.bf16 %v691, %v690
          %v707 = vpack.c.bf16 %v693, %v692
          %v708 = vpack.c.bf16 %v695, %v694
          %v709 = vpack.c.bf16 %v697, %v696
          %v710 = vpack.c.bf16 %v699, %v698
          %v711 = vpack.c.bf16 %v701, %v700
          %v712 = vpack.c.bf16 %v703, %v702
          %v713 = vpack.c.bf16 %v705, %v704
          %v714 = vld [vmem:[%s4] sm:$0xf]
          %v715 = vld [vmem:[%s4 + $0x4] sm:$0xf]
          %v716 = vld [vmem:[%s4 + $0x8] sm:$0xf]
          %v717 = vld [vmem:[%s4 + $0xc] sm:$0xf]
          %v718 = vld [vmem:[%s4 + $0x10] sm:$0xf]
          %v719 = vld [vmem:[%s4 + $0x14] sm:$0xf]
          %v720 = vld [vmem:[%s4 + $0x18] sm:$0xf]
          %v721 = vld [vmem:[%s4 + $0x1c] sm:$0xf]
          %v722 = vld [vmem:[%s4 + $0x20] sm:$0xf]
          %v723 = vld [vmem:[%s4 + $0x24] sm:$0xf]
          %v724 = vld [vmem:[%s4 + $0x28] sm:$0xf]
          %v725 = vld [vmem:[%s4 + $0x2c] sm:$0xf]
          %v726 = vld [vmem:[%s4 + $0x30] sm:$0xf]
          %v727 = vld [vmem:[%s4 + $0x34] sm:$0xf]
          %v728 = vld [vmem:[%s4 + $0x38] sm:$0xf]
          %v729 = vld [vmem:[%s4 + $0x3c] sm:$0xf]
          %v746 = vunpack.c.l.b16 %v714
          %v747 = vunpack.c.l.b16 %v715
          %v748 = vunpack.c.l.b16 %v716
          %v749 = vunpack.c.l.b16 %v717
          %v750 = vunpack.c.l.b16 %v718
          %v751 = vunpack.c.l.b16 %v719
          %v752 = vunpack.c.l.b16 %v720
          %v753 = vunpack.c.l.b16 %v721
          %v754 = vunpack.c.l.b16 %v722
          %v755 = vunpack.c.l.b16 %v723
          %v756 = vunpack.c.l.b16 %v724
          %v757 = vunpack.c.l.b16 %v725
          %v758 = vunpack.c.l.b16 %v726
          %v759 = vunpack.c.l.b16 %v727
          %v760 = vunpack.c.l.b16 %v728
          %v761 = vunpack.c.l.b16 %v729
          %v762 = vpack.c.b16 %v747, %v746
          %v763 = vpack.c.b16 %v749, %v748
          %v764 = vpack.c.b16 %v751, %v750
          %v765 = vpack.c.b16 %v753, %v752
          %v766 = vpack.c.b16 %v755, %v754
          %v767 = vpack.c.b16 %v757, %v756
          %v768 = vpack.c.b16 %v759, %v758
          %v769 = vpack.c.b16 %v761, %v760
          %778 = vmatpush.bf16.msra.mxu0 %v769
          %779 = vmatpush.bf16.msra.mxu0 %v768
          %780 = vmatpush.bf16.msra.mxu0 %v767
          %781 = vmatpush.bf16.msra.mxu0 %v766
          %782 = vmatpush.bf16.msra.mxu0 %v765
          %783 = vmatpush.bf16.msra.mxu0 %v764
          %784 = vmatpush.bf16.msra.mxu0 %v763
          %785 = vmatpush.bf16.msra.mxu0 %v762
          %786 = vmatmul.bf16.gmra.mxu0 %v706
          %v787 = vpop.f32.mrf.mxu0
          %v788 = vadd.f32 0.0, %v787
          %v789 = vpop.f32.mrf.mxu0
          %v790 = vadd.f32 0.0, %v789
          %791 = vmatmul.bf16.gmra.mxu0 %v707
          %v792 = vpop.f32.mrf.mxu0
          %v793 = vadd.f32 0.0, %v792
          %v794 = vpop.f32.mrf.mxu0
          %v795 = vadd.f32 0.0, %v794
          %796 = vmatmul.bf16.gmra.mxu0 %v708
          %v797 = vpop.f32.mrf.mxu0
          %v798 = vadd.f32 0.0, %v797
          %v799 = vpop.f32.mrf.mxu0
          %v800 = vadd.f32 0.0, %v799
          %801 = vmatmul.bf16.gmra.mxu0 %v709
          %v802 = vpop.f32.mrf.mxu0
          %v803 = vadd.f32 0.0, %v802
          %v804 = vpop.f32.mrf.mxu0
          %v805 = vadd.f32 0.0, %v804
          %806 = vmatmul.bf16.gmra.mxu0 %v710
          %v807 = vpop.f32.mrf.mxu0
          %v808 = vadd.f32 0.0, %v807
          %v809 = vpop.f32.mrf.mxu0
          %v810 = vadd.f32 0.0, %v809
          %811 = vmatmul.bf16.gmra.mxu0 %v711
          %v812 = vpop.f32.mrf.mxu0
          %v813 = vadd.f32 0.0, %v812
          %v814 = vpop.f32.mrf.mxu0
          %v815 = vadd.f32 0.0, %v814
          %816 = vmatmul.bf16.gmra.mxu0 %v712
          %v817 = vpop.f32.mrf.mxu0
          %v818 = vadd.f32 0.0, %v817
          %v819 = vpop.f32.mrf.mxu0
          %v820 = vadd.f32 0.0, %v819
          %821 = vmatmul.bf16.gmra.mxu0 %v713
          %v822 = vpop.f32.mrf.mxu0
          %v823 = vadd.f32 0.0, %v822
          %v824 = vpop.f32.mrf.mxu0
          %v825 = vadd.f32 0.0, %v824
          %826 = vdwg.mxu0
          %v827 = vpack.c.bf16 %v788, %v788
          %v828 = vpack.c.bf16 %v790, %v790
          %v829 = vpack.c.bf16 %v793, %v793
          %v830 = vpack.c.bf16 %v795, %v795
          %v831 = vpack.c.bf16 %v798, %v798
          %v832 = vpack.c.bf16 %v800, %v800
          %v833 = vpack.c.bf16 %v803, %v803
          %v834 = vpack.c.bf16 %v805, %v805
          %v835 = vpack.c.bf16 %v808, %v808
          %v836 = vpack.c.bf16 %v810, %v810
          %v837 = vpack.c.bf16 %v813, %v813
          %v838 = vpack.c.bf16 %v815, %v815
          %v839 = vpack.c.bf16 %v818, %v818
          %v840 = vpack.c.bf16 %v820, %v820
          %v841 = vpack.c.bf16 %v823, %v823
          %v842 = vpack.c.bf16 %v825, %v825
          %843 = vst [vmem:[%s367] sm:$0xf] %v827
          %844 = vst [vmem:[%s367 + $0x4] sm:$0xf] %v828
          %845 = vst [vmem:[%s367 + $0x8] sm:$0xf] %v829
          %846 = vst [vmem:[%s367 + $0xc] sm:$0xf] %v830
          %847 = vst [vmem:[%s367 + $0x10] sm:$0xf] %v831
          %848 = vst [vmem:[%s367 + $0x14] sm:$0xf] %v832
          %849 = vst [vmem:[%s367 + $0x18] sm:$0xf] %v833
          %850 = vst [vmem:[%s367 + $0x1c] sm:$0xf] %v834
          %851 = vst [vmem:[%s367 + $0x20] sm:$0xf] %v835
          %852 = vst [vmem:[%s367 + $0x24] sm:$0xf] %v836
          %853 = vst [vmem:[%s367 + $0x28] sm:$0xf] %v837
          %854 = vst [vmem:[%s367 + $0x2c] sm:$0xf] %v838
          %855 = vst [vmem:[%s367 + $0x30] sm:$0xf] %v839
          %856 = vst [vmem:[%s367 + $0x34] sm:$0xf] %v840
          %857 = vst [vmem:[%s367 + $0x38] sm:$0xf] %v841
          %858 = vst [vmem:[%s367 + $0x3c] sm:$0xf] %v842
        $region89: #{double_layered_encoder.2} parent=76 // pred_fallthru
          _
        %s859 = smul.u32 16, %s20
        %p860 = scmp.lt.s32.totalorder %s859, 31
        %s861 = scalar_select %p860, %s859, 31
        %s862 = smul.addr %s861, 4
        %s863 = scalar_lea.vmem %s5, %s862
        // Predicated region
        $region90: #{double_layered_encoder.2} parent=76 // pred_check
          %p864 = pneg %p163
        $region91: #{double_layered_encoder.2} parent=76 // pred_check_branch
          %866 = sbr.rel (%p864) target = $region93
        $region92: #{double_layered_encoder.2} parent=76 // pred_region
          %s867 = smul.u32 16, %s20
        $region93: #{double_layered_encoder.2} parent=76 // pred_fallthru
          _
      $region77: #{double_layered_encoder.2} parent=5 // pred_fallthru
        _
      %p868 = scmp.le.s32.totalorder 2, %s11
      // Predicated region
      $region94: #{double_layered_encoder.2} parent=5 // pred_check
        %p869 = pneg %p868
      $region95: #{double_layered_encoder.2} parent=5 // pred_check_branch
        %871 = sbr.rel (%p869) target = $region97
      $region96: #{double_layered_encoder.2} parent=5 // pred_region
        %s872 = ssub.s32 %s11, 2
        // Predicated region
        $region98: #{double_layered_encoder.2} parent=96 // pred_check
          %p873 = pneg %p169
        $region99: #{double_layered_encoder.2} parent=96 // pred_check_branch
          %875 = sbr.rel (%p873) target = $region101
        $region100: #{double_layered_encoder.2} parent=96 // pred_region
          %s876 = smul.u32 16, %s22
          %p877 = scmp.lt.s32.totalorder %s876, 31
          %s878 = scalar_select %p877, %s876, 31
          %s879 = smul.addr %s878, 4
          %s880 = scalar_lea.vmem %s5, %s879
        $region101: #{double_layered_encoder.2} parent=96 // pred_fallthru
          _
      $region97: #{double_layered_encoder.2} parent=5 // pred_fallthru
        _
    $region6: #{double_layered_encoder.2} parent=1 // loop_footer
      %s15 = sadd.s32 1, %s11
    $region7: #{double_layered_encoder.2} parent=1 // loop_footer_branch
      %10 = sbr.rel target = $region3
    $region8: #{double_layered_encoder.2} parent=1 // loop_exit
      _

// kernel: double_layered_encoder.3
$region0: #{double_layered_encoder.3}
  #allocation0 [shape = 'u32[]', space=smem, size = 0x4, offset = 0x4, fixed_abs, tag = 'smem constant byte address 0x4 - core index']
  #allocation1 [shape = 'u32[72,128]{1,0:T(1,128)}', space=vmem, size = 0x9000, scoped, tag = 'internal scratch']
  #allocation2 [shape = 'f32[128,128]{1,0:T(8,128)}', space=vmem, size = 0x10000, scoped, tag = 'scratch operand']
  #allocation3 [shape = 'f32[128,128]{1,0:T(8,128)}', space=vmem, size = 0x10000, scoped, tag = 'scratch operand']
  %s0 = inlined_call_operand.vmem [shape: bf16[256,256], index: 0, kind: input, shape index: {}, may-alias: {0,1}]
  %s1 = inlined_call_operand.vmem [shape: bf16[256,256], index: 1, kind: input, shape index: {}, may-alias: {0,1}]
  %s2 = inlined_call_operand.vmem [shape: bf16[256,128], index: 2, kind: input, shape index: {}]
  %s3 = inlined_call_operand.vmem [shape: f32[1,128], index: 3, kind: input, shape index: {}]
  %s4 = inlined_call_operand.vmem [shape: f32[1,128], index: 4, kind: input, shape index: {}]
  %s5 = inlined_call_operand.vmem [shape: f32[128,128], index: 5, kind: output, shape index: {}]
  %s6 = sld [smem:[#allocation0]]
  $region143: #{double_layered_encoder.3} parent=0
    _
  %s8 = ssub.s32 1, %s6
  %s9 = scalar_select 0, %s8, %s6
  $region1: #{double_layered_encoder.3} parent=0
    #allocation4 [shape = 'u8[65536]{0}', space=vmem, size = 0x10000, scoped, tag = 'input window, operand 0']
    #allocation5 [shape = 'u8[65536]{0}', space=vmem, size = 0x10000, scoped, tag = 'input window, operand 1']
    loop: start=0, step=1, limit=4
    $region2: #{double_layered_encoder.3} parent=1 // loop_pre_header
      _
    $region3: #{double_layered_encoder.3} parent=1 // loop_header
      %s11 = sphi 0, %s15
      %p12 = scmp.ge.s32.totalorder %s11, 4
      %s18 = sphi 0, %s30
      %s19 = sphi 0, %s26
      %s20 = sphi 0, %s18
      %s21 = sphi 0, %s19
      %s22 = sphi 0, %s20
      %s23 = sphi 0, %s21
      %s35 = sphi 0, %s37
      %s38 = sphi 0, %s35
      %s39 = sphi 0, %s38
      %s55 = sphi 0, %s39
      %s65 = sphi 0, %s67
      %s68 = sphi 0, %s65
      %s69 = sphi 0, %s68
      %s85 = sphi 0, %s69
      %s91 = sphi 0, %s93
      %s94 = sphi 0, %s91
      %s95 = sphi 0, %s94
      %s111 = sphi 0, %s95
      %s115 = sphi 0, %s115
      %s117 = sphi 0, %s115
      %s118 = sphi 0, %s117
      %s132 = sphi 0, %s118
      %s136 = sphi 0, %s136
      %s138 = sphi 0, %s136
      %s139 = sphi 0, %s138
      %s153 = sphi 0, %s139
      %s159 = sphi 0, %s161
      %s162 = sphi 0, %s159
      %s163 = sphi 0, %s162
      %s179 = sphi 0, %s163
    $region4: #{double_layered_encoder.3} parent=1 // loop_header_branch
      %14 = sbr.rel (%p12) target = $region8
    $region5: #{double_layered_encoder.3} parent=1 // loop_body
      %s16 = ssub.s32 %s11, 1
      %s17 = ssub.s32 %s11, 2
      %s24 = sadd.s32 1, %s19
      %p25 = scmp.ge.s32.totalorder %s24, 2
      %s26 = scalar_select %p25, 0, %s24
      %s27 = sadd.s32 1, %s18
      %s28 = scalar_select %p25, %s27, %s18
      %p29 = scmp.ge.s32.totalorder %s28, 1
      %s30 = scalar_select %p29, 0, %s28
      %s31 = ssub.s32 %s18, %s30
      %s32 = ssub.s32 %s19, %s26
      %s33 = sor.u32 %s31, %s32
      %p34 = scmp.eq.s32.totalorder %s33, 0
      %s36 = sadd.s32 %s35, 1
      %s37 = scalar_select %p34, %s35, %s36
      %p40 = pneg %p34
      %p41 = scmp.eq.s32.totalorder %s11, 1
      %p42 = por %p40, %p41
      %p43 = scmp.ne.s32.totalorder %s35, %s38
      %p44 = scmp.eq.s32.totalorder %s11, 0
      %p45 = por %p43, %p44
      %p46 = scmp.ne.s32.totalorder %s35, %s38
      %p47 = scmp.eq.s32.totalorder %s16, 1
      %p48 = por %p46, %p47
      %p49 = scmp.ne.s32.totalorder %s38, %s39
      %p50 = scmp.eq.s32.totalorder %s16, 0
      %p51 = por %p49, %p50
      %p52 = scmp.ne.s32.totalorder %s38, %s39
      %p53 = scmp.eq.s32.totalorder %s17, 1
      %p54 = por %p52, %p53
      %p56 = scmp.ne.s32.totalorder %s39, %s55
      %p57 = scmp.eq.s32.totalorder %s17, 0
      %p58 = por %p56, %p57
      %s59 = sadd.s32 %s18, 1
      %s60 = sadd.s32 %s30, 1
      %s61 = ssub.s32 %s59, %s60
      %s62 = ssub.s32 %s19, %s26
      %s63 = sor.u32 %s61, %s62
      %p64 = scmp.eq.s32.totalorder %s63, 0
      %s66 = sadd.s32 %s65, 1
      %s67 = scalar_select %p64, %s65, %s66
      %p70 = pneg %p64
      %p71 = scmp.eq.s32.totalorder %s11, 1
      %p72 = por %p70, %p71
      %p73 = scmp.ne.s32.totalorder %s65, %s68
      %p74 = scmp.eq.s32.totalorder %s11, 0
      %p75 = por %p73, %p74
      %p76 = scmp.ne.s32.totalorder %s65, %s68
      %p77 = scmp.eq.s32.totalorder %s16, 1
      %p78 = por %p76, %p77
      %p79 = scmp.ne.s32.totalorder %s68, %s69
      %p80 = scmp.eq.s32.totalorder %s16, 0
      %p81 = por %p79, %p80
      %p82 = scmp.ne.s32.totalorder %s68, %s69
      %p83 = scmp.eq.s32.totalorder %s17, 1
      %p84 = por %p82, %p83
      %p86 = scmp.ne.s32.totalorder %s69, %s85
      %p87 = scmp.eq.s32.totalorder %s17, 0
      %p88 = por %p86, %p87
      %s89 = ssub.s32 %s19, %s26
      %p90 = scmp.eq.s32.totalorder %s89, 0
      %s92 = sadd.s32 %s91, 1
      %s93 = scalar_select %p90, %s91, %s92
      %p96 = pneg %p90
      %p97 = scmp.eq.s32.totalorder %s11, 1
      %p98 = por %p96, %p97
      %p99 = scmp.ne.s32.totalorder %s91, %s94
      %p100 = scmp.eq.s32.totalorder %s11, 0
      %p101 = por %p99, %p100
      %p102 = scmp.ne.s32.totalorder %s91, %s94
      %p103 = scmp.eq.s32.totalorder %s16, 1
      %p104 = por %p102, %p103
      %p105 = scmp.ne.s32.totalorder %s94, %s95
      %p106 = scmp.eq.s32.totalorder %s16, 0
      %p107 = por %p105, %p106
      %p108 = scmp.ne.s32.totalorder %s94, %s95
      %p109 = scmp.eq.s32.totalorder %s17, 1
      %p110 = por %p108, %p109
      %p112 = scmp.ne.s32.totalorder %s95, %s111
      %p113 = scmp.eq.s32.totalorder %s17, 0
      %p114 = por %p112, %p113
      %s116 = sadd.s32 %s115, 1
      %p119 = scmp.eq.s32.totalorder %s11, 1
      %p120 = scmp.ne.s32.totalorder %s115, %s117
      %p121 = scmp.eq.s32.totalorder %s11, 0
      %p122 = por %p120, %p121
      %p123 = scmp.ne.s32.totalorder %s115, %s117
      %p124 = scmp.eq.s32.totalorder %s16, 1
      %p125 = por %p123, %p124
      %p126 = scmp.ne.s32.totalorder %s117, %s118
      %p127 = scmp.eq.s32.totalorder %s16, 0
      %p128 = por %p126, %p127
      %p129 = scmp.ne.s32.totalorder %s117, %s118
      %p130 = scmp.eq.s32.totalorder %s17, 1
      %p131 = por %p129, %p130
      %p133 = scmp.ne.s32.totalorder %s118, %s132
      %p134 = scmp.eq.s32.totalorder %s17, 0
      %p135 = por %p133, %p134
      %s137 = sadd.s32 %s136, 1
      %p140 = scmp.eq.s32.totalorder %s11, 1
      %p141 = scmp.ne.s32.totalorder %s136, %s138
      %p142 = scmp.eq.s32.totalorder %s11, 0
      %p143 = por %p141, %p142
      %p144 = scmp.ne.s32.totalorder %s136, %s138
      %p145 = scmp.eq.s32.totalorder %s16, 1
      %p146 = por %p144, %p145
      %p147 = scmp.ne.s32.totalorder %s138, %s139
      %p148 = scmp.eq.s32.totalorder %s16, 0
      %p149 = por %p147, %p148
      %p150 = scmp.ne.s32.totalorder %s138, %s139
      %p151 = scmp.eq.s32.totalorder %s17, 1
      %p152 = por %p150, %p151
      %p154 = scmp.ne.s32.totalorder %s139, %s153
      %p155 = scmp.eq.s32.totalorder %s17, 0
      %p156 = por %p154, %p155
      %s157 = ssub.s32 %s18, %s30
      %p158 = scmp.eq.s32.totalorder %s157, 0
      %s160 = sadd.s32 %s159, 1
      %s161 = scalar_select %p158, %s159, %s160
      %p164 = pneg %p158
      %p165 = scmp.eq.s32.totalorder %s11, 1
      %p166 = por %p164, %p165
      %p167 = scmp.ne.s32.totalorder %s159, %s162
      %p168 = scmp.eq.s32.totalorder %s11, 0
      %p169 = por %p167, %p168
      %p170 = scmp.ne.s32.totalorder %s159, %s162
      %p171 = scmp.eq.s32.totalorder %s16, 1
      %p172 = por %p170, %p171
      %p173 = scmp.ne.s32.totalorder %s162, %s163
      %p174 = scmp.eq.s32.totalorder %s16, 0
      %p175 = por %p173, %p174
      %p176 = scmp.ne.s32.totalorder %s162, %s163
      %p177 = scmp.eq.s32.totalorder %s17, 1
      %p178 = por %p176, %p177
      %p180 = scmp.ne.s32.totalorder %s163, %s179
      %p181 = scmp.eq.s32.totalorder %s17, 0
      %p182 = por %p180, %p181
      %p183 = scmp.le.s32.totalorder 1, %s11
      %p184 = scmp.lt.s32.totalorder %s11, 3
      %p185 = pnand %p183, %p184
      %p186 = pneg %p185
      // Predicated region
      $region9: #{double_layered_encoder.3} parent=5 // pred_check
        _
      $region10: #{double_layered_encoder.3} parent=5 // pred_check_branch
        %188 = sbr.rel (%p185) target = $region12
      $region11: #{double_layered_encoder.3} parent=5 // pred_region
        %s189 = ssub.s32 %s11, 1
        // Predicated region
        $region13: #{double_layered_encoder.3} parent=11 // pred_check
          %p190 = pneg %p128
        $region14: #{double_layered_encoder.3} parent=11 // pred_check_branch
          %192 = sbr.rel (%p190) target = $region16
        $region15: #{double_layered_encoder.3} parent=11 // pred_region
          _
        $region16: #{double_layered_encoder.3} parent=11 // pred_fallthru
          _
        // Predicated region
        $region17: #{double_layered_encoder.3} parent=11 // pred_check
          %p193 = pneg %p149
        $region18: #{double_layered_encoder.3} parent=11 // pred_check_branch
          %195 = sbr.rel (%p193) target = $region20
        $region19: #{double_layered_encoder.3} parent=11 // pred_region
          _
        $region20: #{double_layered_encoder.3} parent=11 // pred_fallthru
          _
      $region12: #{double_layered_encoder.3} parent=5 // pred_fallthru
        _
      %p196 = scmp.lt.s32.totalorder %s11, 2
      // Predicated region
      $region21: #{double_layered_encoder.3} parent=5 // pred_check
        %p197 = pneg %p196
      $region22: #{double_layered_encoder.3} parent=5 // pred_check_branch
        %199 = sbr.rel (%p197) target = $region24
      $region23: #{double_layered_encoder.3} parent=5 // pred_region
        // Predicated region
        $region25: #{double_layered_encoder.3} parent=23 // pred_check
          %p200 = pneg %p45
        $region26: #{double_layered_encoder.3} parent=23 // pred_check_branch
          %202 = sbr.rel (%p200) target = $region28
        $region27: #{double_layered_encoder.3} parent=23 // pred_region
          %s203 = sand.u32 %s35, 1
          %s204 = sand.u32 %s35, 1
          %s205 = smul.addr %s204, 64
          %s206 = scalar_lea.vmem [#allocation4], %s205
          %s207 = smul.u32 16, %s18
          %s208 = smul.addr %s207, 2
          %s209 = sadd.s32 %s19, %s208
          %s210 = smul.addr %s209, 4
          %s211 = scalar_lea.vmem %s0, %s210
          // Predicated region
          $region29: #{double_layered_encoder.3} parent=27 // pred_check
            _
          $region30: #{double_layered_encoder.3} parent=27 // pred_check_branch
            %213 = sbr.rel (0) target = $region32
          $region31: #{double_layered_encoder.3} parent=27 // pred_region
            // Predicated region
            $region33: #{double_layered_encoder.3} parent=31 // pred_check
              _
            $region34: #{double_layered_encoder.3} parent=31 // pred_check_branch
              %215 = sbr.rel target = $region36
            $region35: #{double_layered_encoder.3} parent=31 // pred_region
              // Predicated region
              $region48: #{double_layered_encoder.3} parent=35 // pred_check
                _
              $region49: #{double_layered_encoder.3} parent=35 // pred_check_branch
                %261 = sbr.rel (0) target = $region51
              $region50: #{double_layered_encoder.3} parent=35 // pred_region
                loop: start=0, step=1, limit=1
                $region52: #{double_layered_encoder.3} parent=50 // loop_pre_header
                  _
                $region53: #{double_layered_encoder.3} parent=50 // loop_header
                  %s263 = sphi 0, %s267
                  %p264 = scmp.ge.s32.totalorder %s263, 1
                  %s268 = sphi %s211, %s211
                  %s269 = sphi %s206, %s206
                $region54: #{double_layered_encoder.3} parent=50 // loop_header_branch
                  %266 = sbr.rel (%p264) target = $region58
                $region55: #{double_layered_encoder.3} parent=50 // loop_body
                  _
                $region56: #{double_layered_encoder.3} parent=50 // loop_footer
                  %s267 = sadd.s32 1, %s263
                $region57: #{double_layered_encoder.3} parent=50 // loop_footer_branch
                  %262 = sbr.rel target = $region53
                $region58: #{double_layered_encoder.3} parent=50 // loop_exit
                  _
                %s271 = ssub.s32 16, 1
                loop: start=0, step=1, limit=1
                $region59: #{double_layered_encoder.3} parent=50 // loop_pre_header
                  _
                $region60: #{double_layered_encoder.3} parent=50 // loop_header
                  %s273 = sphi 0, %s277
                  %p274 = scmp.ge.s32.totalorder %s273, 1
                  %s278 = sphi %s211, %s211
                  %s279 = sphi %s206, %s206
                $region61: #{double_layered_encoder.3} parent=50 // loop_header_branch
                  %276 = sbr.rel (%p274) target = $region65
                $region62: #{double_layered_encoder.3} parent=50 // loop_body
                  %v280 = vld [vmem:[%s278] sm:%s271]
                  %281 = vst [vmem:[%s279] sm:%s271] %v280
                  %v282 = vld [vmem:[%s278 + $0x8] sm:%s271]
                  %283 = vst [vmem:[%s279 + $0x4] sm:%s271] %v282
                  %v284 = vld [vmem:[%s278 + $0x10] sm:%s271]
                  %285 = vst [vmem:[%s279 + $0x8] sm:%s271] %v284
                  %v286 = vld [vmem:[%s278 + $0x18] sm:%s271]
                  %287 = vst [vmem:[%s279 + $0xc] sm:%s271] %v286
                  %v288 = vld [vmem:[%s278 + $0x20] sm:%s271]
                  %289 = vst [vmem:[%s279 + $0x10] sm:%s271] %v288
                  %v290 = vld [vmem:[%s278 + $0x28] sm:%s271]
                  %291 = vst [vmem:[%s279 + $0x14] sm:%s271] %v290
                  %v292 = vld [vmem:[%s278 + $0x30] sm:%s271]
                  %293 = vst [vmem:[%s279 + $0x18] sm:%s271] %v292
                  %v294 = vld [vmem:[%s278 + $0x38] sm:%s271]
                  %295 = vst [vmem:[%s279 + $0x1c] sm:%s271] %v294
                  %v296 = vld [vmem:[%s278 + $0x40] sm:%s271]
                  %297 = vst [vmem:[%s279 + $0x20] sm:%s271] %v296
                  %v298 = vld [vmem:[%s278 + $0x48] sm:%s271]
                  %299 = vst [vmem:[%s279 + $0x24] sm:%s271] %v298
                  %v300 = vld [vmem:[%s278 + $0x50] sm:%s271]
                  %301 = vst [vmem:[%s279 + $0x28] sm:%s271] %v300
                  %v302 = vld [vmem:[%s278 + $0x58] sm:%s271]
                  %303 = vst [vmem:[%s279 + $0x2c] sm:%s271] %v302
                  %v304 = vld [vmem:[%s278 + $0x60] sm:%s271]
                  %305 = vst [vmem:[%s279 + $0x30] sm:%s271] %v304
                  %v306 = vld [vmem:[%s278 + $0x68] sm:%s271]
                  %307 = vst [vmem:[%s279 + $0x34] sm:%s271] %v306
                  %v308 = vld [vmem:[%s278 + $0x70] sm:%s271]
                  %309 = vst [vmem:[%s279 + $0x38] sm:%s271] %v308
                  %v310 = vld [vmem:[%s278 + $0x78] sm:%s271]
                  %311 = vst [vmem:[%s279 + $0x3c] sm:%s271] %v310
                $region63: #{double_layered_encoder.3} parent=50 // loop_footer
                  %s277 = sadd.s32 1, %s273
                $region64: #{double_layered_encoder.3} parent=50 // loop_footer_branch
                  %272 = sbr.rel target = $region60
                $region65: #{double_layered_encoder.3} parent=50 // loop_exit
                  _
              $region51: #{double_layered_encoder.3} parent=35 // pred_fallthru
                _
            $region36: #{double_layered_encoder.3} parent=31 // pred_fallthru
              _
            // Predicated region
            $region37: #{double_layered_encoder.3} parent=31 // pred_check
              _
            $region38: #{double_layered_encoder.3} parent=31 // pred_check_branch
              %217 = sbr.rel (0) target = $region40
            $region39: #{double_layered_encoder.3} parent=31 // pred_region
              %s219 = ssub.s32 16, 1
              loop: start=0, step=1, limit=1
              $region41: #{double_layered_encoder.3} parent=39 // loop_pre_header
                _
              $region42: #{double_layered_encoder.3} parent=39 // loop_header
                %s221 = sphi 0, %s225
                %p222 = scmp.ge.s32.totalorder %s221, 1
                %s226 = sphi %s211, %s211
                %s227 = sphi %s206, %s206
              $region43: #{double_layered_encoder.3} parent=39 // loop_header_branch
                %224 = sbr.rel (%p222) target = $region47
              $region44: #{double_layered_encoder.3} parent=39 // loop_body
                %v228 = vld [vmem:[%s226] sm:%s219]
                %229 = vst [vmem:[%s227] sm:%s219] %v228
                %v230 = vld [vmem:[%s226 + $0x8] sm:%s219]
                %231 = vst [vmem:[%s227 + $0x4] sm:%s219] %v230
                %v232 = vld [vmem:[%s226 + $0x10] sm:%s219]
                %233 = vst [vmem:[%s227 + $0x8] sm:%s219] %v232
                %v234 = vld [vmem:[%s226 + $0x18] sm:%s219]
                %235 = vst [vmem:[%s227 + $0xc] sm:%s219] %v234
                %v236 = vld [vmem:[%s226 + $0x20] sm:%s219]
                %237 = vst [vmem:[%s227 + $0x10] sm:%s219] %v236
                %v238 = vld [vmem:[%s226 + $0x28] sm:%s219]
                %239 = vst [vmem:[%s227 + $0x14] sm:%s219] %v238
                %v240 = vld [vmem:[%s226 + $0x30] sm:%s219]
                %241 = vst [vmem:[%s227 + $0x18] sm:%s219] %v240
                %v242 = vld [vmem:[%s226 + $0x38] sm:%s219]
                %243 = vst [vmem:[%s227 + $0x1c] sm:%s219] %v242
                %v244 = vld [vmem:[%s226 + $0x40] sm:%s219]
                %245 = vst [vmem:[%s227 + $0x20] sm:%s219] %v244
                %v246 = vld [vmem:[%s226 + $0x48] sm:%s219]
                %247 = vst [vmem:[%s227 + $0x24] sm:%s219] %v246
                %v248 = vld [vmem:[%s226 + $0x50] sm:%s219]
                %249 = vst [vmem:[%s227 + $0x28] sm:%s219] %v248
                %v250 = vld [vmem:[%s226 + $0x58] sm:%s219]
                %251 = vst [vmem:[%s227 + $0x2c] sm:%s219] %v250
                %v252 = vld [vmem:[%s226 + $0x60] sm:%s219]
                %253 = vst [vmem:[%s227 + $0x30] sm:%s219] %v252
                %v254 = vld [vmem:[%s226 + $0x68] sm:%s219]
                %255 = vst [vmem:[%s227 + $0x34] sm:%s219] %v254
                %v256 = vld [vmem:[%s226 + $0x70] sm:%s219]
                %257 = vst [vmem:[%s227 + $0x38] sm:%s219] %v256
                %v258 = vld [vmem:[%s226 + $0x78] sm:%s219]
                %259 = vst [vmem:[%s227 + $0x3c] sm:%s219] %v258
              $region45: #{double_layered_encoder.3} parent=39 // loop_footer
                %s225 = sadd.s32 1, %s221
              $region46: #{double_layered_encoder.3} parent=39 // loop_footer_branch
                %220 = sbr.rel target = $region42
              $region47: #{double_layered_encoder.3} parent=39 // loop_exit
                _
            $region40: #{double_layered_encoder.3} parent=31 // pred_fallthru
              _
          $region32: #{double_layered_encoder.3} parent=27 // pred_fallthru
            _
          %312 = vnop
        $region28: #{double_layered_encoder.3} parent=23 // pred_fallthru
          _
        // Predicated region
        $region66: #{double_layered_encoder.3} parent=23 // pred_check
          %p313 = pneg %p75
        $region67: #{double_layered_encoder.3} parent=23 // pred_check_branch
          %315 = sbr.rel (%p313) target = $region69
        $region68: #{double_layered_encoder.3} parent=23 // pred_region
          %s316 = sand.u32 %s65, 1
          %s317 = sand.u32 %s65, 1
          %s318 = smul.addr %s317, 64
          %s319 = scalar_lea.vmem [#allocation5], %s318
          %s320 = sadd.s32 %s18, 1
          %s321 = smul.u32 16, %s320
          %s322 = smul.addr %s321, 2
          %s323 = sadd.s32 %s19, %s322
          %s324 = smul.addr %s323, 4
          %s325 = scalar_lea.vmem %s1, %s324
          // Predicated region
          $region70: #{double_layered_encoder.3} parent=68 // pred_check
            _
          $region71: #{double_layered_encoder.3} parent=68 // pred_check_branch
            %327 = sbr.rel (0) target = $region73
          $region72: #{double_layered_encoder.3} parent=68 // pred_region
            // Predicated region
            $region74: #{double_layered_encoder.3} parent=72 // pred_check
              _
            $region75: #{double_layered_encoder.3} parent=72 // pred_check_branch
              %329 = sbr.rel target = $region77
            $region76: #{double_layered_encoder.3} parent=72 // pred_region
              // Predicated region
              $region89: #{double_layered_encoder.3} parent=76 // pred_check
                _
              $region90: #{double_layered_encoder.3} parent=76 // pred_check_branch
                %375 = sbr.rel (0) target = $region92
              $region91: #{double_layered_encoder.3} parent=76 // pred_region
                loop: start=0, step=1, limit=1
                $region93: #{double_layered_encoder.3} parent=91 // loop_pre_header
                  _
                $region94: #{double_layered_encoder.3} parent=91 // loop_header
                  %s377 = sphi 0, %s381
                  %p378 = scmp.ge.s32.totalorder %s377, 1
                  %s382 = sphi %s325, %s325
                  %s383 = sphi %s319, %s319
                $region95: #{double_layered_encoder.3} parent=91 // loop_header_branch
                  %380 = sbr.rel (%p378) target = $region99
                $region96: #{double_layered_encoder.3} parent=91 // loop_body
                  _
                $region97: #{double_layered_encoder.3} parent=91 // loop_footer
                  %s381 = sadd.s32 1, %s377
                $region98: #{double_layered_encoder.3} parent=91 // loop_footer_branch
                  %376 = sbr.rel target = $region94
                $region99: #{double_layered_encoder.3} parent=91 // loop_exit
                  _
                %s385 = ssub.s32 16, 1
                loop: start=0, step=1, limit=1
                $region100: #{double_layered_encoder.3} parent=91 // loop_pre_header
                  _
                $region101: #{double_layered_encoder.3} parent=91 // loop_header
                  %s387 = sphi 0, %s391
                  %p388 = scmp.ge.s32.totalorder %s387, 1
                  %s392 = sphi %s325, %s325
                  %s393 = sphi %s319, %s319
                $region102: #{double_layered_encoder.3} parent=91 // loop_header_branch
                  %390 = sbr.rel (%p388) target = $region106
                $region103: #{double_layered_encoder.3} parent=91 // loop_body
                  %v394 = vld [vmem:[%s392] sm:%s385]
                  %395 = vst [vmem:[%s393] sm:%s385] %v394
                  %v396 = vld [vmem:[%s392 + $0x8] sm:%s385]
                  %397 = vst [vmem:[%s393 + $0x4] sm:%s385] %v396
                  %v398 = vld [vmem:[%s392 + $0x10] sm:%s385]
                  %399 = vst [vmem:[%s393 + $0x8] sm:%s385] %v398
                  %v400 = vld [vmem:[%s392 + $0x18] sm:%s385]
                  %401 = vst [vmem:[%s393 + $0xc] sm:%s385] %v400
                  %v402 = vld [vmem:[%s392 + $0x20] sm:%s385]
                  %403 = vst [vmem:[%s393 + $0x10] sm:%s385] %v402
                  %v404 = vld [vmem:[%s392 + $0x28] sm:%s385]
                  %405 = vst [vmem:[%s393 + $0x14] sm:%s385] %v404
                  %v406 = vld [vmem:[%s392 + $0x30] sm:%s385]
                  %407 = vst [vmem:[%s393 + $0x18] sm:%s385] %v406
                  %v408 = vld [vmem:[%s392 + $0x38] sm:%s385]
                  %409 = vst [vmem:[%s393 + $0x1c] sm:%s385] %v408
                  %v410 = vld [vmem:[%s392 + $0x40] sm:%s385]
                  %411 = vst [vmem:[%s393 + $0x20] sm:%s385] %v410
                  %v412 = vld [vmem:[%s392 + $0x48] sm:%s385]
                  %413 = vst [vmem:[%s393 + $0x24] sm:%s385] %v412
                  %v414 = vld [vmem:[%s392 + $0x50] sm:%s385]
                  %415 = vst [vmem:[%s393 + $0x28] sm:%s385] %v414
                  %v416 = vld [vmem:[%s392 + $0x58] sm:%s385]
                  %417 = vst [vmem:[%s393 + $0x2c] sm:%s385] %v416
                  %v418 = vld [vmem:[%s392 + $0x60] sm:%s385]
                  %419 = vst [vmem:[%s393 + $0x30] sm:%s385] %v418
                  %v420 = vld [vmem:[%s392 + $0x68] sm:%s385]
                  %421 = vst [vmem:[%s393 + $0x34] sm:%s385] %v420
                  %v422 = vld [vmem:[%s392 + $0x70] sm:%s385]
                  %423 = vst [vmem:[%s393 + $0x38] sm:%s385] %v422
                  %v424 = vld [vmem:[%s392 + $0x78] sm:%s385]
                  %425 = vst [vmem:[%s393 + $0x3c] sm:%s385] %v424
                $region104: #{double_layered_encoder.3} parent=91 // loop_footer
                  %s391 = sadd.s32 1, %s387
                $region105: #{double_layered_encoder.3} parent=91 // loop_footer_branch
                  %386 = sbr.rel target = $region101
                $region106: #{double_layered_encoder.3} parent=91 // loop_exit
                  _
              $region92: #{double_layered_encoder.3} parent=76 // pred_fallthru
                _
            $region77: #{double_layered_encoder.3} parent=72 // pred_fallthru
              _
            // Predicated region
            $region78: #{double_layered_encoder.3} parent=72 // pred_check
              _
            $region79: #{double_layered_encoder.3} parent=72 // pred_check_branch
              %331 = sbr.rel (0) target = $region81
            $region80: #{double_layered_encoder.3} parent=72 // pred_region
              %s333 = ssub.s32 16, 1
              loop: start=0, step=1, limit=1
              $region82: #{double_layered_encoder.3} parent=80 // loop_pre_header
                _
              $region83: #{double_layered_encoder.3} parent=80 // loop_header
                %s335 = sphi 0, %s339
                %p336 = scmp.ge.s32.totalorder %s335, 1
                %s340 = sphi %s325, %s325
                %s341 = sphi %s319, %s319
              $region84: #{double_layered_encoder.3} parent=80 // loop_header_branch
                %338 = sbr.rel (%p336) target = $region88
              $region85: #{double_layered_encoder.3} parent=80 // loop_body
                %v342 = vld [vmem:[%s340] sm:%s333]
                %343 = vst [vmem:[%s341] sm:%s333] %v342
                %v344 = vld [vmem:[%s340 + $0x8] sm:%s333]
                %345 = vst [vmem:[%s341 + $0x4] sm:%s333] %v344
                %v346 = vld [vmem:[%s340 + $0x10] sm:%s333]
                %347 = vst [vmem:[%s341 + $0x8] sm:%s333] %v346
                %v348 = vld [vmem:[%s340 + $0x18] sm:%s333]
                %349 = vst [vmem:[%s341 + $0xc] sm:%s333] %v348
                %v350 = vld [vmem:[%s340 + $0x20] sm:%s333]
                %351 = vst [vmem:[%s341 + $0x10] sm:%s333] %v350
                %v352 = vld [vmem:[%s340 + $0x28] sm:%s333]
                %353 = vst [vmem:[%s341 + $0x14] sm:%s333] %v352
                %v354 = vld [vmem:[%s340 + $0x30] sm:%s333]
                %355 = vst [vmem:[%s341 + $0x18] sm:%s333] %v354
                %v356 = vld [vmem:[%s340 + $0x38] sm:%s333]
                %357 = vst [vmem:[%s341 + $0x1c] sm:%s333] %v356
                %v358 = vld [vmem:[%s340 + $0x40] sm:%s333]
                %359 = vst [vmem:[%s341 + $0x20] sm:%s333] %v358
                %v360 = vld [vmem:[%s340 + $0x48] sm:%s333]
                %361 = vst [vmem:[%s341 + $0x24] sm:%s333] %v360
                %v362 = vld [vmem:[%s340 + $0x50] sm:%s333]
                %363 = vst [vmem:[%s341 + $0x28] sm:%s333] %v362
                %v364 = vld [vmem:[%s340 + $0x58] sm:%s333]
                %365 = vst [vmem:[%s341 + $0x2c] sm:%s333] %v364
                %v366 = vld [vmem:[%s340 + $0x60] sm:%s333]
                %367 = vst [vmem:[%s341 + $0x30] sm:%s333] %v366
                %v368 = vld [vmem:[%s340 + $0x68] sm:%s333]
                %369 = vst [vmem:[%s341 + $0x34] sm:%s333] %v368
                %v370 = vld [vmem:[%s340 + $0x70] sm:%s333]
                %371 = vst [vmem:[%s341 + $0x38] sm:%s333] %v370
                %v372 = vld [vmem:[%s340 + $0x78] sm:%s333]
                %373 = vst [vmem:[%s341 + $0x3c] sm:%s333] %v372
              $region86: #{double_layered_encoder.3} parent=80 // loop_footer
                %s339 = sadd.s32 1, %s335
              $region87: #{double_layered_encoder.3} parent=80 // loop_footer_branch
                %334 = sbr.rel target = $region83
              $region88: #{double_layered_encoder.3} parent=80 // loop_exit
                _
            $region81: #{double_layered_encoder.3} parent=72 // pred_fallthru
              _
          $region73: #{double_layered_encoder.3} parent=68 // pred_fallthru
            _
          %426 = vnop
        $region69: #{double_layered_encoder.3} parent=23 // pred_fallthru
          _
        // Predicated region
        $region107: #{double_layered_encoder.3} parent=23 // pred_check
          %p427 = pneg %p101
        $region108: #{double_layered_encoder.3} parent=23 // pred_check_branch
          %429 = sbr.rel (%p427) target = $region110
        $region109: #{double_layered_encoder.3} parent=23 // pred_region
          %s430 = smul.u32 16, %s19
          %p431 = scmp.lt.s32.totalorder %s430, 31
          %s432 = scalar_select %p431, %s430, 31
          %s433 = smul.addr %s432, 4
          %s434 = scalar_lea.vmem %s2, %s433
          %s435 = smul.u32 16, %s19
        $region110: #{double_layered_encoder.3} parent=23 // pred_fallthru
          _
      $region24: #{double_layered_encoder.3} parent=5 // pred_fallthru
        _
      %p436 = scmp.le.s32.totalorder 1, %s11
      %p437 = scmp.lt.s32.totalorder %s11, 3
      %p438 = pnand %p436, %p437
      %p439 = pneg %p438
      // Predicated region
      $region111: #{double_layered_encoder.3} parent=5 // pred_check
        _
      $region112: #{double_layered_encoder.3} parent=5 // pred_check_branch
        %441 = sbr.rel (%p438) target = $region114
      $region113: #{double_layered_encoder.3} parent=5 // pred_region
        %s442 = ssub.s32 %s11, 1
        %s443 = sand.u32 %s38, 1
        %s444 = sand.u32 %s38, 1
        %s445 = smul.addr %s444, 64
        %s446 = scalar_lea.vmem [#allocation4], %s445
        // Predicated region
        $region115: #{double_layered_encoder.3} parent=113 // pred_check
          %p447 = pneg %p51
        $region116: #{double_layered_encoder.3} parent=113 // pred_check_branch
          %449 = sbr.rel (%p447) target = $region118
        $region117: #{double_layered_encoder.3} parent=113 // pred_region
          _
        $region118: #{double_layered_encoder.3} parent=113 // pred_fallthru
          _
        %s450 = sand.u32 %s68, 1
        %s451 = sand.u32 %s68, 1
        %s452 = smul.addr %s451, 64
        %s453 = scalar_lea.vmem [#allocation5], %s452
        // Predicated region
        $region119: #{double_layered_encoder.3} parent=113 // pred_check
          %p454 = pneg %p81
        $region120: #{double_layered_encoder.3} parent=113 // pred_check_branch
          %456 = sbr.rel (%p454) target = $region122
        $region121: #{double_layered_encoder.3} parent=113 // pred_region
          _
        $region122: #{double_layered_encoder.3} parent=113 // pred_fallthru
          _
        %s457 = sand.u32 %s38, 1
        %s458 = sand.u32 %s38, 1
        %s459 = smul.addr %s458, 64
        %s460 = scalar_lea.vmem [#allocation4], %s459
        %p461 = pneg %p51
        %p462 = pneg %p48
        %s463 = sand.u32 %s68, 1
        %s464 = sand.u32 %s68, 1
        %s465 = smul.addr %s464, 64
        %s466 = scalar_lea.vmem [#allocation5], %s465
        %p467 = pneg %p81
        %p468 = pneg %p78
        %s469 = smul.u32 16, %s21
        %p470 = scmp.lt.s32.totalorder %s469, 31
        %s471 = scalar_select %p470, %s469, 31
        %s472 = smul.addr %s471, 4
        %s473 = scalar_lea.vmem %s2, %s472
        %p474 = pneg %p107
        %p475 = pneg %p104
        %p476 = pneg %p128
        %p477 = pneg %p125
        %p478 = pneg %p149
        %p479 = pneg %p146
        %p480 = pneg %p175
        %p481 = pneg %p172
        %s482 = smul.u32 16, %s20
        %p483 = scmp.lt.s32.totalorder %s482, 15
        %s484 = scalar_select %p483, %s482, 15
        %s485 = smul.addr %s484, 8
        %s486 = scalar_lea.vmem %s5, %s485
        %s487 = smul.u32 16, %s20
        %s488 = sadd.s32 %s20, 1
        %s489 = smul.u32 16, %s488
        %s490 = smul.u32 16, %s21
        %p491 = scmp.lt.s32.totalorder %s490, 31
        %s492 = scalar_select %p491, %s490, 31
        %s493 = smul.addr %s492, 4
        %s494 = scalar_lea.vmem %s2, %s493
        %s495 = smul.u32 16, %s21
        %s496 = smul.u32 16, %s20
        %p497 = scmp.lt.s32.totalorder %s496, 15
        %s498 = scalar_select %p497, %s496, 15
        %s499 = smul.addr %s498, 8
        %s500 = scalar_lea.vmem %s5, %s499
        %s501 = smul.u32 16, %s20
        %p502 = scmp.eq.s32.totalorder %s21, 0
        // Predicated region
        $region123: #{double_layered_encoder.3} parent=113 // pred_check
          %p503 = pneg %p502
        $region124: #{double_layered_encoder.3} parent=113 // pred_check_branch
          %505 = sbr.rel (%p503) target = $region126
        $region125: #{double_layered_encoder.3} parent=113 // pred_region
          %506 = vst [vmem:[#allocation2] sm:$0xff] 0.0
          %507 = vst [vmem:[#allocation2 + $0x8] sm:$0xff] 0.0
          %508 = vst [vmem:[#allocation2 + $0x10] sm:$0xff] 0.0
          %509 = vst [vmem:[#allocation2 + $0x18] sm:$0xff] 0.0
          %510 = vst [vmem:[#allocation2 + $0x20] sm:$0xff] 0.0
          %511 = vst [vmem:[#allocation2 + $0x28] sm:$0xff] 0.0
          %512 = vst [vmem:[#allocation2 + $0x30] sm:$0xff] 0.0
          %513 = vst [vmem:[#allocation2 + $0x38] sm:$0xff] 0.0
          %514 = vst [vmem:[#allocation2 + $0x40] sm:$0xff] 0.0
          %515 = vst [vmem:[#allocation2 + $0x48] sm:$0xff] 0.0
          %516 = vst [vmem:[#allocation2 + $0x50] sm:$0xff] 0.0
          %517 = vst [vmem:[#allocation2 + $0x58] sm:$0xff] 0.0
          %518 = vst [vmem:[#allocation2 + $0x60] sm:$0xff] 0.0
          %519 = vst [vmem:[#allocation2 + $0x68] sm:$0xff] 0.0
          %520 = vst [vmem:[#allocation2 + $0x70] sm:$0xff] 0.0
          %521 = vst [vmem:[#allocation2 + $0x78] sm:$0xff] 0.0
          %522 = vst [vmem:[#allocation3] sm:$0xff] 0.0
          %523 = vst [vmem:[#allocation3 + $0x8] sm:$0xff] 0.0
          %524 = vst [vmem:[#allocation3 + $0x10] sm:$0xff] 0.0
          %525 = vst [vmem:[#allocation3 + $0x18] sm:$0xff] 0.0
          %526 = vst [vmem:[#allocation3 + $0x20] sm:$0xff] 0.0
          %527 = vst [vmem:[#allocation3 + $0x28] sm:$0xff] 0.0
          %528 = vst [vmem:[#allocation3 + $0x30] sm:$0xff] 0.0
          %529 = vst [vmem:[#allocation3 + $0x38] sm:$0xff] 0.0
          %530 = vst [vmem:[#allocation3 + $0x40] sm:$0xff] 0.0
          %531 = vst [vmem:[#allocation3 + $0x48] sm:$0xff] 0.0
          %532 = vst [vmem:[#allocation3 + $0x50] sm:$0xff] 0.0
          %533 = vst [vmem:[#allocation3 + $0x58] sm:$0xff] 0.0
          %534 = vst [vmem:[#allocation3 + $0x60] sm:$0xff] 0.0
          %535 = vst [vmem:[#allocation3 + $0x68] sm:$0xff] 0.0
          %536 = vst [vmem:[#allocation3 + $0x70] sm:$0xff] 0.0
          %537 = vst [vmem:[#allocation3 + $0x78] sm:$0xff] 0.0
        $region126: #{double_layered_encoder.3} parent=113 // pred_fallthru
          _
        %v538 = vld [vmem:[%s494] sm:$0xf]
        %v539 = vld [vmem:[%s494 + $0x4] sm:$0xf]
        %v540 = vld [vmem:[%s494 + $0x8] sm:$0xf]
        %v541 = vld [vmem:[%s494 + $0xc] sm:$0xf]
        %v542 = vld [vmem:[%s494 + $0x10] sm:$0xf]
        %v543 = vld [vmem:[%s494 + $0x14] sm:$0xf]
        %v544 = vld [vmem:[%s494 + $0x18] sm:$0xf]
        %v545 = vld [vmem:[%s494 + $0x1c] sm:$0xf]
        %v546 = vld [vmem:[%s494 + $0x20] sm:$0xf]
        %v547 = vld [vmem:[%s494 + $0x24] sm:$0xf]
        %v548 = vld [vmem:[%s494 + $0x28] sm:$0xf]
        %v549 = vld [vmem:[%s494 + $0x2c] sm:$0xf]
        %v550 = vld [vmem:[%s494 + $0x30] sm:$0xf]
        %v551 = vld [vmem:[%s494 + $0x34] sm:$0xf]
        %v552 = vld [vmem:[%s494 + $0x38] sm:$0xf]
        %v553 = vld [vmem:[%s494 + $0x3c] sm:$0xf]
        %v554 = vld [vmem:[#allocation2] sm:$0xff]
        %v555 = vld [vmem:[#allocation2 + $0x8] sm:$0xff]
        %v556 = vld [vmem:[#allocation2 + $0x10] sm:$0xff]
        %v557 = vld [vmem:[#allocation2 + $0x18] sm:$0xff]
        %v558 = vld [vmem:[#allocation2 + $0x20] sm:$0xff]
        %v559 = vld [vmem:[#allocation2 + $0x28] sm:$0xff]
        %v560 = vld [vmem:[#allocation2 + $0x30] sm:$0xff]
        %v561 = vld [vmem:[#allocation2 + $0x38] sm:$0xff]
        %v562 = vld [vmem:[#allocation2 + $0x40] sm:$0xff]
        %v563 = vld [vmem:[#allocation2 + $0x48] sm:$0xff]
        %v564 = vld [vmem:[#allocation2 + $0x50] sm:$0xff]
        %v565 = vld [vmem:[#allocation2 + $0x58] sm:$0xff]
        %v566 = vld [vmem:[#allocation2 + $0x60] sm:$0xff]
        %v567 = vld [vmem:[#allocation2 + $0x68] sm:$0xff]
        %v568 = vld [vmem:[#allocation2 + $0x70] sm:$0xff]
        %v569 = vld [vmem:[#allocation2 + $0x78] sm:$0xff]
        %v570 = vld [vmem:[%s446] sm:$0xf]
        %v571 = vld [vmem:[%s446 + $0x4] sm:$0xf]
        %v572 = vld [vmem:[%s446 + $0x8] sm:$0xf]
        %v573 = vld [vmem:[%s446 + $0xc] sm:$0xf]
        %v574 = vld [vmem:[%s446 + $0x10] sm:$0xf]
        %v575 = vld [vmem:[%s446 + $0x14] sm:$0xf]
        %v576 = vld [vmem:[%s446 + $0x18] sm:$0xf]
        %v577 = vld [vmem:[%s446 + $0x1c] sm:$0xf]
        %v578 = vld [vmem:[%s446 + $0x20] sm:$0xf]
        %v579 = vld [vmem:[%s446 + $0x24] sm:$0xf]
        %v580 = vld [vmem:[%s446 + $0x28] sm:$0xf]
        %v581 = vld [vmem:[%s446 + $0x2c] sm:$0xf]
        %v582 = vld [vmem:[%s446 + $0x30] sm:$0xf]
        %v583 = vld [vmem:[%s446 + $0x34] sm:$0xf]
        %v584 = vld [vmem:[%s446 + $0x38] sm:$0xf]
        %v585 = vld [vmem:[%s446 + $0x3c] sm:$0xf]
        %v602 = vunpack.c.l.b16 %v570
        %v603 = vunpack.c.l.b16 %v571
        %v604 = vunpack.c.l.b16 %v572
        %v605 = vunpack.c.l.b16 %v573
        %v606 = vunpack.c.l.b16 %v574
        %v607 = vunpack.c.l.b16 %v575
        %v608 = vunpack.c.l.b16 %v576
        %v609 = vunpack.c.l.b16 %v577
        %v610 = vunpack.c.l.b16 %v578
        %v611 = vunpack.c.l.b16 %v579
        %v612 = vunpack.c.l.b16 %v580
        %v613 = vunpack.c.l.b16 %v581
        %v614 = vunpack.c.l.b16 %v582
        %v615 = vunpack.c.l.b16 %v583
        %v616 = vunpack.c.l.b16 %v584
        %v617 = vunpack.c.l.b16 %v585
        %v618 = vpack.c.b16 %v603, %v602
        %v619 = vpack.c.b16 %v605, %v604
        %v620 = vpack.c.b16 %v607, %v606
        %v621 = vpack.c.b16 %v609, %v608
        %v622 = vpack.c.b16 %v611, %v610
        %v623 = vpack.c.b16 %v613, %v612
        %v624 = vpack.c.b16 %v615, %v614
        %v625 = vpack.c.b16 %v617, %v616
        %v650 = vunpack.c.l.b16 %v538
        %v651 = vunpack.c.l.b16 %v539
        %v652 = vunpack.c.l.b16 %v540
        %v653 = vunpack.c.l.b16 %v541
        %v654 = vunpack.c.l.b16 %v542
        %v655 = vunpack.c.l.b16 %v543
        %v656 = vunpack.c.l.b16 %v544
        %v657 = vunpack.c.l.b16 %v545
        %v658 = vunpack.c.l.b16 %v546
        %v659 = vunpack.c.l.b16 %v547
        %v660 = vunpack.c.l.b16 %v548
        %v661 = vunpack.c.l.b16 %v549
        %v662 = vunpack.c.l.b16 %v550
        %v663 = vunpack.c.l.b16 %v551
        %v664 = vunpack.c.l.b16 %v552
        %v665 = vunpack.c.l.b16 %v553
        %v666 = vpack.c.b16 %v651, %v650
        %v667 = vpack.c.b16 %v653, %v652
        %v668 = vpack.c.b16 %v655, %v654
        %v669 = vpack.c.b16 %v657, %v656
        %v670 = vpack.c.b16 %v659, %v658
        %v671 = vpack.c.b16 %v661, %v660
        %v672 = vpack.c.b16 %v663, %v662
        %v673 = vpack.c.b16 %v665, %v664
        %682 = vmatpush.bf16.msra.mxu0 %v673
        %683 = vmatpush.bf16.msra.mxu0 %v672
        %684 = vmatpush.bf16.msra.mxu0 %v671
        %685 = vmatpush.bf16.msra.mxu0 %v670
        %686 = vmatpush.bf16.msra.mxu0 %v669
        %687 = vmatpush.bf16.msra.mxu0 %v668
        %688 = vmatpush.bf16.msra.mxu0 %v667
        %689 = vmatpush.bf16.msra.mxu0 %v666
        %690 = vmatmul.bf16.gmra.mxu0 %v618
        %v691 = vpop.f32.mrf.mxu0
        %v692 = vadd.f32 0.0, %v691
        %v693 = vpop.f32.mrf.mxu0
        %v694 = vadd.f32 0.0, %v693
        %695 = vmatmul.bf16.gmra.mxu0 %v619
        %v696 = vpop.f32.mrf.mxu0
        %v697 = vadd.f32 0.0, %v696
        %v698 = vpop.f32.mrf.mxu0
        %v699 = vadd.f32 0.0, %v698
        %700 = vmatmul.bf16.gmra.mxu0 %v620
        %v701 = vpop.f32.mrf.mxu0
        %v702 = vadd.f32 0.0, %v701
        %v703 = vpop.f32.mrf.mxu0
        %v704 = vadd.f32 0.0, %v703
        %705 = vmatmul.bf16.gmra.mxu0 %v621
        %v706 = vpop.f32.mrf.mxu0
        %v707 = vadd.f32 0.0, %v706
        %v708 = vpop.f32.mrf.mxu0
        %v709 = vadd.f32 0.0, %v708
        %710 = vmatmul.bf16.gmra.mxu0 %v622
        %v711 = vpop.f32.mrf.mxu0
        %v712 = vadd.f32 0.0, %v711
        %v713 = vpop.f32.mrf.mxu0
        %v714 = vadd.f32 0.0, %v713
        %715 = vmatmul.bf16.gmra.mxu0 %v623
        %v716 = vpop.f32.mrf.mxu0
        %v717 = vadd.f32 0.0, %v716
        %v718 = vpop.f32.mrf.mxu0
        %v719 = vadd.f32 0.0, %v718
        %720 = vmatmul.bf16.gmra.mxu0 %v624
        %v721 = vpop.f32.mrf.mxu0
        %v722 = vadd.f32 0.0, %v721
        %v723 = vpop.f32.mrf.mxu0
        %v724 = vadd.f32 0.0, %v723
        %725 = vmatmul.bf16.gmra.mxu0 %v625
        %v726 = vpop.f32.mrf.mxu0
        %v727 = vadd.f32 0.0, %v726
        %v728 = vpop.f32.mrf.mxu0
        %v729 = vadd.f32 0.0, %v728
        %730 = vdwg.mxu0
        %v731 = vadd.f32 %v554, %v692
        %v732 = vadd.f32 %v555, %v694
        %v733 = vadd.f32 %v556, %v697
        %v734 = vadd.f32 %v557, %v699
        %v735 = vadd.f32 %v558, %v702
        %v736 = vadd.f32 %v559, %v704
        %v737 = vadd.f32 %v560, %v707
        %v738 = vadd.f32 %v561, %v709
        %v739 = vadd.f32 %v562, %v712
        %v740 = vadd.f32 %v563, %v714
        %v741 = vadd.f32 %v564, %v717
        %v742 = vadd.f32 %v565, %v719
        %v743 = vadd.f32 %v566, %v722
        %v744 = vadd.f32 %v567, %v724
        %v745 = vadd.f32 %v568, %v727
        %v746 = vadd.f32 %v569, %v729
        %747 = vst [vmem:[#allocation2] sm:$0xff] %v731
        %748 = vst [vmem:[#allocation2 + $0x8] sm:$0xff] %v732
        %749 = vst [vmem:[#allocation2 + $0x10] sm:$0xff] %v733
        %750 = vst [vmem:[#allocation2 + $0x18] sm:$0xff] %v734
        %751 = vst [vmem:[#allocation2 + $0x20] sm:$0xff] %v735
        %752 = vst [vmem:[#allocation2 + $0x28] sm:$0xff] %v736
        %753 = vst [vmem:[#allocation2 + $0x30] sm:$0xff] %v737
        %754 = vst [vmem:[#allocation2 + $0x38] sm:$0xff] %v738
        %755 = vst [vmem:[#allocation2 + $0x40] sm:$0xff] %v739
        %756 = vst [vmem:[#allocation2 + $0x48] sm:$0xff] %v740
        %757 = vst [vmem:[#allocation2 + $0x50] sm:$0xff] %v741
        %758 = vst [vmem:[#allocation2 + $0x58] sm:$0xff] %v742
        %759 = vst [vmem:[#allocation2 + $0x60] sm:$0xff] %v743
        %760 = vst [vmem:[#allocation2 + $0x68] sm:$0xff] %v744
        %761 = vst [vmem:[#allocation2 + $0x70] sm:$0xff] %v745
        %762 = vst [vmem:[#allocation2 + $0x78] sm:$0xff] %v746
        %v763 = vld [vmem:[#allocation3] sm:$0xff]
        %v764 = vld [vmem:[#allocation3 + $0x8] sm:$0xff]
        %v765 = vld [vmem:[#allocation3 + $0x10] sm:$0xff]
        %v766 = vld [vmem:[#allocation3 + $0x18] sm:$0xff]
        %v767 = vld [vmem:[#allocation3 + $0x20] sm:$0xff]
        %v768 = vld [vmem:[#allocation3 + $0x28] sm:$0xff]
        %v769 = vld [vmem:[#allocation3 + $0x30] sm:$0xff]
        %v770 = vld [vmem:[#allocation3 + $0x38] sm:$0xff]
        %v771 = vld [vmem:[#allocation3 + $0x40] sm:$0xff]
        %v772 = vld [vmem:[#allocation3 + $0x48] sm:$0xff]
        %v773 = vld [vmem:[#allocation3 + $0x50] sm:$0xff]
        %v774 = vld [vmem:[#allocation3 + $0x58] sm:$0xff]
        %v775 = vld [vmem:[#allocation3 + $0x60] sm:$0xff]
        %v776 = vld [vmem:[#allocation3 + $0x68] sm:$0xff]
        %v777 = vld [vmem:[#allocation3 + $0x70] sm:$0xff]
        %v778 = vld [vmem:[#allocation3 + $0x78] sm:$0xff]
        %v779 = vld [vmem:[%s453] sm:$0xf]
        %v780 = vld [vmem:[%s453 + $0x4] sm:$0xf]
        %v781 = vld [vmem:[%s453 + $0x8] sm:$0xf]
        %v782 = vld [vmem:[%s453 + $0xc] sm:$0xf]
        %v783 = vld [vmem:[%s453 + $0x10] sm:$0xf]
        %v784 = vld [vmem:[%s453 + $0x14] sm:$0xf]
        %v785 = vld [vmem:[%s453 + $0x18] sm:$0xf]
        %v786 = vld [vmem:[%s453 + $0x1c] sm:$0xf]
        %v787 = vld [vmem:[%s453 + $0x20] sm:$0xf]
        %v788 = vld [vmem:[%s453 + $0x24] sm:$0xf]
        %v789 = vld [vmem:[%s453 + $0x28] sm:$0xf]
        %v790 = vld [vmem:[%s453 + $0x2c] sm:$0xf]
        %v791 = vld [vmem:[%s453 + $0x30] sm:$0xf]
        %v792 = vld [vmem:[%s453 + $0x34] sm:$0xf]
        %v793 = vld [vmem:[%s453 + $0x38] sm:$0xf]
        %v794 = vld [vmem:[%s453 + $0x3c] sm:$0xf]
        %v811 = vunpack.c.l.b16 %v779
        %v812 = vunpack.c.l.b16 %v780
        %v813 = vunpack.c.l.b16 %v781
        %v814 = vunpack.c.l.b16 %v782
        %v815 = vunpack.c.l.b16 %v783
        %v816 = vunpack.c.l.b16 %v784
        %v817 = vunpack.c.l.b16 %v785
        %v818 = vunpack.c.l.b16 %v786
        %v819 = vunpack.c.l.b16 %v787
        %v820 = vunpack.c.l.b16 %v788
        %v821 = vunpack.c.l.b16 %v789
        %v822 = vunpack.c.l.b16 %v790
        %v823 = vunpack.c.l.b16 %v791
        %v824 = vunpack.c.l.b16 %v792
        %v825 = vunpack.c.l.b16 %v793
        %v826 = vunpack.c.l.b16 %v794
        %v827 = vpack.c.b16 %v812, %v811
        %v828 = vpack.c.b16 %v814, %v813
        %v829 = vpack.c.b16 %v816, %v815
        %v830 = vpack.c.b16 %v818, %v817
        %v831 = vpack.c.b16 %v820, %v819
        %v832 = vpack.c.b16 %v822, %v821
        %v833 = vpack.c.b16 %v824, %v823
        %v834 = vpack.c.b16 %v826, %v825
        %843 = vmatpush.bf16.msra.mxu0 %v673
        %844 = vmatpush.bf16.msra.mxu0 %v672
        %845 = vmatpush.bf16.msra.mxu0 %v671
        %846 = vmatpush.bf16.msra.mxu0 %v670
        %847 = vmatpush.bf16.msra.mxu0 %v669
        %848 = vmatpush.bf16.msra.mxu0 %v668
        %849 = vmatpush.bf16.msra.mxu0 %v667
        %850 = vmatpush.bf16.msra.mxu0 %v666
        %851 = vmatmul.bf16.gmra.mxu0 %v827
        %v852 = vpop.f32.mrf.mxu0
        %v853 = vadd.f32 0.0, %v852
        %v854 = vpop.f32.mrf.mxu0
        %v855 = vadd.f32 0.0, %v854
        %856 = vmatmul.bf16.gmra.mxu0 %v828
        %v857 = vpop.f32.mrf.mxu0
        %v858 = vadd.f32 0.0, %v857
        %v859 = vpop.f32.mrf.mxu0
        %v860 = vadd.f32 0.0, %v859
        %861 = vmatmul.bf16.gmra.mxu0 %v829
        %v862 = vpop.f32.mrf.mxu0
        %v863 = vadd.f32 0.0, %v862
        %v864 = vpop.f32.mrf.mxu0
        %v865 = vadd.f32 0.0, %v864
        %866 = vmatmul.bf16.gmra.mxu0 %v830
        %v867 = vpop.f32.mrf.mxu0
        %v868 = vadd.f32 0.0, %v867
        %v869 = vpop.f32.mrf.mxu0
        %v870 = vadd.f32 0.0, %v869
        %871 = vmatmul.bf16.gmra.mxu0 %v831
        %v872 = vpop.f32.mrf.mxu0
        %v873 = vadd.f32 0.0, %v872
        %v874 = vpop.f32.mrf.mxu0
        %v875 = vadd.f32 0.0, %v874
        %876 = vmatmul.bf16.gmra.mxu0 %v832
        %v877 = vpop.f32.mrf.mxu0
        %v878 = vadd.f32 0.0, %v877
        %v879 = vpop.f32.mrf.mxu0
        %v880 = vadd.f32 0.0, %v879
        %881 = vmatmul.bf16.gmra.mxu0 %v833
        %v882 = vpop.f32.mrf.mxu0
        %v883 = vadd.f32 0.0, %v882
        %v884 = vpop.f32.mrf.mxu0
        %v885 = vadd.f32 0.0, %v884
        %886 = vmatmul.bf16.gmra.mxu0 %v834
        %v887 = vpop.f32.mrf.mxu0
        %v888 = vadd.f32 0.0, %v887
        %v889 = vpop.f32.mrf.mxu0
        %v890 = vadd.f32 0.0, %v889
        %891 = vdwg.mxu0
        %v892 = vadd.f32 %v763, %v853
        %v893 = vadd.f32 %v764, %v855
        %v894 = vadd.f32 %v765, %v858
        %v895 = vadd.f32 %v766, %v860
        %v896 = vadd.f32 %v767, %v863
        %v897 = vadd.f32 %v768, %v865
        %v898 = vadd.f32 %v769, %v868
        %v899 = vadd.f32 %v770, %v870
        %v900 = vadd.f32 %v771, %v873
        %v901 = vadd.f32 %v772, %v875
        %v902 = vadd.f32 %v773, %v878
        %v903 = vadd.f32 %v774, %v880
        %v904 = vadd.f32 %v775, %v883
        %v905 = vadd.f32 %v776, %v885
        %v906 = vadd.f32 %v777, %v888
        %v907 = vadd.f32 %v778, %v890
        %908 = vst [vmem:[#allocation3] sm:$0xff] %v892
        %909 = vst [vmem:[#allocation3 + $0x8] sm:$0xff] %v893
        %910 = vst [vmem:[#allocation3 + $0x10] sm:$0xff] %v894
        %911 = vst [vmem:[#allocation3 + $0x18] sm:$0xff] %v895
        %912 = vst [vmem:[#allocation3 + $0x20] sm:$0xff] %v896
        %913 = vst [vmem:[#allocation3 + $0x28] sm:$0xff] %v897
        %914 = vst [vmem:[#allocation3 + $0x30] sm:$0xff] %v898
        %915 = vst [vmem:[#allocation3 + $0x38] sm:$0xff] %v899
        %916 = vst [vmem:[#allocation3 + $0x40] sm:$0xff] %v900
        %917 = vst [vmem:[#allocation3 + $0x48] sm:$0xff] %v901
        %918 = vst [vmem:[#allocation3 + $0x50] sm:$0xff] %v902
        %919 = vst [vmem:[#allocation3 + $0x58] sm:$0xff] %v903
        %920 = vst [vmem:[#allocation3 + $0x60] sm:$0xff] %v904
        %921 = vst [vmem:[#allocation3 + $0x68] sm:$0xff] %v905
        %922 = vst [vmem:[#allocation3 + $0x70] sm:$0xff] %v906
        %923 = vst [vmem:[#allocation3 + $0x78] sm:$0xff] %v907
        %p924 = scmp.eq.s32.totalorder %s21, 1
        // Predicated region
        $region127: #{double_layered_encoder.3} parent=113 // pred_check
          %p925 = pneg %p924
        $region128: #{double_layered_encoder.3} parent=113 // pred_check_branch
          %927 = sbr.rel (%p925) target = $region130
        $region129: #{double_layered_encoder.3} parent=113 // pred_region
          %v928 = vld [vmem:[#allocation2] sm:$0xff]
          %v929 = vld [vmem:[#allocation2 + $0x8] sm:$0xff]
          %v930 = vld [vmem:[#allocation2 + $0x10] sm:$0xff]
          %v931 = vld [vmem:[#allocation2 + $0x18] sm:$0xff]
          %v932 = vld [vmem:[#allocation2 + $0x20] sm:$0xff]
          %v933 = vld [vmem:[#allocation2 + $0x28] sm:$0xff]
          %v934 = vld [vmem:[#allocation2 + $0x30] sm:$0xff]
          %v935 = vld [vmem:[#allocation2 + $0x38] sm:$0xff]
          %v936 = vld [vmem:[#allocation2 + $0x40] sm:$0xff]
          %v937 = vld [vmem:[#allocation2 + $0x48] sm:$0xff]
          %v938 = vld [vmem:[#allocation2 + $0x50] sm:$0xff]
          %v939 = vld [vmem:[#allocation2 + $0x58] sm:$0xff]
          %v940 = vld [vmem:[#allocation2 + $0x60] sm:$0xff]
          %v941 = vld [vmem:[#allocation2 + $0x68] sm:$0xff]
          %v942 = vld [vmem:[#allocation2 + $0x70] sm:$0xff]
          %v943 = vld [vmem:[#allocation2 + $0x78] sm:$0xff]
          %v944 = vld [vmem:[%s3] sm:$0x1]
          %v946 = vperm.slane %v944, 0
          %v948 = vadd.f32 %v928, %v946
          %v949 = vadd.f32 %v929, %v946
          %v950 = vadd.f32 %v930, %v946
          %v951 = vadd.f32 %v931, %v946
          %v952 = vadd.f32 %v932, %v946
          %v953 = vadd.f32 %v933, %v946
          %v954 = vadd.f32 %v934, %v946
          %v955 = vadd.f32 %v935, %v946
          %v956 = vadd.f32 %v936, %v946
          %v957 = vadd.f32 %v937, %v946
          %v958 = vadd.f32 %v938, %v946
          %v959 = vadd.f32 %v939, %v946
          %v960 = vadd.f32 %v940, %v946
          %v961 = vadd.f32 %v941, %v946
          %v962 = vadd.f32 %v942, %v946
          %v963 = vadd.f32 %v943, %v946
          %vm964 = vcmp.ge.f32.partialorder %v948, 0.0
          %vm965 = vcmp.ge.f32.partialorder %v949, 0.0
          %vm966 = vcmp.ge.f32.partialorder %v950, 0.0
          %vm967 = vcmp.ge.f32.partialorder %v951, 0.0
          %vm968 = vcmp.ge.f32.partialorder %v952, 0.0
          %vm969 = vcmp.ge.f32.partialorder %v953, 0.0
          %vm970 = vcmp.ge.f32.partialorder %v954, 0.0
          %vm971 = vcmp.ge.f32.partialorder %v955, 0.0
          %vm972 = vcmp.ge.f32.partialorder %v956, 0.0
          %vm973 = vcmp.ge.f32.partialorder %v957, 0.0
          %vm974 = vcmp.ge.f32.partialorder %v958, 0.0
          %vm975 = vcmp.ge.f32.partialorder %v959, 0.0
          %vm976 = vcmp.ge.f32.partialorder %v960, 0.0
          %vm977 = vcmp.ge.f32.partialorder %v961, 0.0
          %vm978 = vcmp.ge.f32.partialorder %v962, 0.0
          %vm979 = vcmp.ge.f32.partialorder %v963, 0.0
          %v980 = vld [vmem:[%s4] sm:$0x1]
          %v982 = vperm.slane %v980, 0
          %v984 = vmul.f32 %v982, %v948
          %v985 = vmul.f32 %v982, %v949
          %v986 = vmul.f32 %v982, %v950
          %v987 = vmul.f32 %v982, %v951
          %v988 = vmul.f32 %v982, %v952
          %v989 = vmul.f32 %v982, %v953
          %v990 = vmul.f32 %v982, %v954
          %v991 = vmul.f32 %v982, %v955
          %v992 = vmul.f32 %v982, %v956
          %v993 = vmul.f32 %v982, %v957
          %v994 = vmul.f32 %v982, %v958
          %v995 = vmul.f32 %v982, %v959
          %v996 = vmul.f32 %v982, %v960
          %v997 = vmul.f32 %v982, %v961
          %v998 = vmul.f32 %v982, %v962
          %v999 = vmul.f32 %v982, %v963
          %v1000 = vsel %vm964, %v948, %v984
          %v1001 = vsel %vm965, %v949, %v985
          %v1002 = vsel %vm966, %v950, %v986
          %v1003 = vsel %vm967, %v951, %v987
          %v1004 = vsel %vm968, %v952, %v988
          %v1005 = vsel %vm969, %v953, %v989
          %v1006 = vsel %vm970, %v954, %v990
          %v1007 = vsel %vm971, %v955, %v991
          %v1008 = vsel %vm972, %v956, %v992
          %v1009 = vsel %vm973, %v957, %v993
          %v1010 = vsel %vm974, %v958, %v994
          %v1011 = vsel %vm975, %v959, %v995
          %v1012 = vsel %vm976, %v960, %v996
          %v1013 = vsel %vm977, %v961, %v997
          %v1014 = vsel %vm978, %v962, %v998
          %v1015 = vsel %vm979, %v963, %v999
          %v1016 = vld [vmem:[#allocation3] sm:$0xff]
          %v1017 = vld [vmem:[#allocation3 + $0x8] sm:$0xff]
          %v1018 = vld [vmem:[#allocation3 + $0x10] sm:$0xff]
          %v1019 = vld [vmem:[#allocation3 + $0x18] sm:$0xff]
          %v1020 = vld [vmem:[#allocation3 + $0x20] sm:$0xff]
          %v1021 = vld [vmem:[#allocation3 + $0x28] sm:$0xff]
          %v1022 = vld [vmem:[#allocation3 + $0x30] sm:$0xff]
          %v1023 = vld [vmem:[#allocation3 + $0x38] sm:$0xff]
          %v1024 = vld [vmem:[#allocation3 + $0x40] sm:$0xff]
          %v1025 = vld [vmem:[#allocation3 + $0x48] sm:$0xff]
          %v1026 = vld [vmem:[#allocation3 + $0x50] sm:$0xff]
          %v1027 = vld [vmem:[#allocation3 + $0x58] sm:$0xff]
          %v1028 = vld [vmem:[#allocation3 + $0x60] sm:$0xff]
          %v1029 = vld [vmem:[#allocation3 + $0x68] sm:$0xff]
          %v1030 = vld [vmem:[#allocation3 + $0x70] sm:$0xff]
          %v1031 = vld [vmem:[#allocation3 + $0x78] sm:$0xff]
          %v1032 = vadd.f32 %v1016, %v946
          %v1033 = vadd.f32 %v1017, %v946
          %v1034 = vadd.f32 %v1018, %v946
          %v1035 = vadd.f32 %v1019, %v946
          %v1036 = vadd.f32 %v1020, %v946
          %v1037 = vadd.f32 %v1021, %v946
          %v1038 = vadd.f32 %v1022, %v946
          %v1039 = vadd.f32 %v1023, %v946
          %v1040 = vadd.f32 %v1024, %v946
          %v1041 = vadd.f32 %v1025, %v946
          %v1042 = vadd.f32 %v1026, %v946
          %v1043 = vadd.f32 %v1027, %v946
          %v1044 = vadd.f32 %v1028, %v946
          %v1045 = vadd.f32 %v1029, %v946
          %v1046 = vadd.f32 %v1030, %v946
          %v1047 = vadd.f32 %v1031, %v946
          %vm1048 = vcmp.ge.f32.partialorder %v1032, 0.0
          %vm1049 = vcmp.ge.f32.partialorder %v1033, 0.0
          %vm1050 = vcmp.ge.f32.partialorder %v1034, 0.0
          %vm1051 = vcmp.ge.f32.partialorder %v1035, 0.0
          %vm1052 = vcmp.ge.f32.partialorder %v1036, 0.0
          %vm1053 = vcmp.ge.f32.partialorder %v1037, 0.0
          %vm1054 = vcmp.ge.f32.partialorder %v1038, 0.0
          %vm1055 = vcmp.ge.f32.partialorder %v1039, 0.0
          %vm1056 = vcmp.ge.f32.partialorder %v1040, 0.0
          %vm1057 = vcmp.ge.f32.partialorder %v1041, 0.0
          %vm1058 = vcmp.ge.f32.partialorder %v1042, 0.0
          %vm1059 = vcmp.ge.f32.partialorder %v1043, 0.0
          %vm1060 = vcmp.ge.f32.partialorder %v1044, 0.0
          %vm1061 = vcmp.ge.f32.partialorder %v1045, 0.0
          %vm1062 = vcmp.ge.f32.partialorder %v1046, 0.0
          %vm1063 = vcmp.ge.f32.partialorder %v1047, 0.0
          %v1064 = vmul.f32 %v982, %v1032
          %v1065 = vmul.f32 %v982, %v1033
          %v1066 = vmul.f32 %v982, %v1034
          %v1067 = vmul.f32 %v982, %v1035
          %v1068 = vmul.f32 %v982, %v1036
          %v1069 = vmul.f32 %v982, %v1037
          %v1070 = vmul.f32 %v982, %v1038
          %v1071 = vmul.f32 %v982, %v1039
          %v1072 = vmul.f32 %v982, %v1040
          %v1073 = vmul.f32 %v982, %v1041
          %v1074 = vmul.f32 %v982, %v1042
          %v1075 = vmul.f32 %v982, %v1043
          %v1076 = vmul.f32 %v982, %v1044
          %v1077 = vmul.f32 %v982, %v1045
          %v1078 = vmul.f32 %v982, %v1046
          %v1079 = vmul.f32 %v982, %v1047
          %v1080 = vsel %vm1048, %v1032, %v1064
          %v1081 = vsel %vm1049, %v1033, %v1065
          %v1082 = vsel %vm1050, %v1034, %v1066
          %v1083 = vsel %vm1051, %v1035, %v1067
          %v1084 = vsel %vm1052, %v1036, %v1068
          %v1085 = vsel %vm1053, %v1037, %v1069
          %v1086 = vsel %vm1054, %v1038, %v1070
          %v1087 = vsel %vm1055, %v1039, %v1071
          %v1088 = vsel %vm1056, %v1040, %v1072
          %v1089 = vsel %vm1057, %v1041, %v1073
          %v1090 = vsel %vm1058, %v1042, %v1074
          %v1091 = vsel %vm1059, %v1043, %v1075
          %v1092 = vsel %vm1060, %v1044, %v1076
          %v1093 = vsel %vm1061, %v1045, %v1077
          %v1094 = vsel %vm1062, %v1046, %v1078
          %v1095 = vsel %vm1063, %v1047, %v1079
          %v1096 = vadd.f32 %v1000, %v1080
          %v1097 = vadd.f32 %v1001, %v1081
          %v1098 = vadd.f32 %v1002, %v1082
          %v1099 = vadd.f32 %v1003, %v1083
          %v1100 = vadd.f32 %v1004, %v1084
          %v1101 = vadd.f32 %v1005, %v1085
          %v1102 = vadd.f32 %v1006, %v1086
          %v1103 = vadd.f32 %v1007, %v1087
          %v1104 = vadd.f32 %v1008, %v1088
          %v1105 = vadd.f32 %v1009, %v1089
          %v1106 = vadd.f32 %v1010, %v1090
          %v1107 = vadd.f32 %v1011, %v1091
          %v1108 = vadd.f32 %v1012, %v1092
          %v1109 = vadd.f32 %v1013, %v1093
          %v1110 = vadd.f32 %v1014, %v1094
          %v1111 = vadd.f32 %v1015, %v1095
          %v1112 = vmul.f32 %v1096, 0.5
          %v1113 = vmul.f32 %v1097, 0.5
          %v1114 = vmul.f32 %v1098, 0.5
          %v1115 = vmul.f32 %v1099, 0.5
          %v1116 = vmul.f32 %v1100, 0.5
          %v1117 = vmul.f32 %v1101, 0.5
          %v1118 = vmul.f32 %v1102, 0.5
          %v1119 = vmul.f32 %v1103, 0.5
          %v1120 = vmul.f32 %v1104, 0.5
          %v1121 = vmul.f32 %v1105, 0.5
          %v1122 = vmul.f32 %v1106, 0.5
          %v1123 = vmul.f32 %v1107, 0.5
          %v1124 = vmul.f32 %v1108, 0.5
          %v1125 = vmul.f32 %v1109, 0.5
          %v1126 = vmul.f32 %v1110, 0.5
          %v1127 = vmul.f32 %v1111, 0.5
          %1128 = vst [vmem:[%s500] sm:$0xff] %v1112
          %1129 = vst [vmem:[%s500 + $0x8] sm:$0xff] %v1113
          %1130 = vst [vmem:[%s500 + $0x10] sm:$0xff] %v1114
          %1131 = vst [vmem:[%s500 + $0x18] sm:$0xff] %v1115
          %1132 = vst [vmem:[%s500 + $0x20] sm:$0xff] %v1116
          %1133 = vst [vmem:[%s500 + $0x28] sm:$0xff] %v1117
          %1134 = vst [vmem:[%s500 + $0x30] sm:$0xff] %v1118
          %1135 = vst [vmem:[%s500 + $0x38] sm:$0xff] %v1119
          %1136 = vst [vmem:[%s500 + $0x40] sm:$0xff] %v1120
          %1137 = vst [vmem:[%s500 + $0x48] sm:$0xff] %v1121
          %1138 = vst [vmem:[%s500 + $0x50] sm:$0xff] %v1122
          %1139 = vst [vmem:[%s500 + $0x58] sm:$0xff] %v1123
          %1140 = vst [vmem:[%s500 + $0x60] sm:$0xff] %v1124
          %1141 = vst [vmem:[%s500 + $0x68] sm:$0xff] %v1125
          %1142 = vst [vmem:[%s500 + $0x70] sm:$0xff] %v1126
          %1143 = vst [vmem:[%s500 + $0x78] sm:$0xff] %v1127
        $region130: #{double_layered_encoder.3} parent=113 // pred_fallthru
          _
        %s1144 = smul.u32 16, %s20
        %p1145 = scmp.lt.s32.totalorder %s1144, 15
        %s1146 = scalar_select %p1145, %s1144, 15
        %s1147 = smul.addr %s1146, 8
        %s1148 = scalar_lea.vmem %s5, %s1147
        // Predicated region
        $region131: #{double_layered_encoder.3} parent=113 // pred_check
          %p1149 = pneg %p172
        $region132: #{double_layered_encoder.3} parent=113 // pred_check_branch
          %1151 = sbr.rel (%p1149) target = $region134
        $region133: #{double_layered_encoder.3} parent=113 // pred_region
          %s1152 = smul.u32 16, %s20
        $region134: #{double_layered_encoder.3} parent=113 // pred_fallthru
          _
        // Predicated region
        $region135: #{double_layered_encoder.3} parent=113 // pred_check
          %p1153 = pneg %p172
        $region136: #{double_layered_encoder.3} parent=113 // pred_check_branch
          %1155 = sbr.rel (%p1153) target = $region138
        $region137: #{double_layered_encoder.3} parent=113 // pred_region
          %s1156 = smul.u32 16, %s20
          %p1157 = scmp.lt.s32.totalorder %s1156, 15
          %s1158 = scalar_select %p1157, %s1156, 15
          %s1159 = smul.addr %s1158, 8
          %s1160 = scalar_lea.vmem %s5, %s1159
        $region138: #{double_layered_encoder.3} parent=113 // pred_fallthru
          _
      $region114: #{double_layered_encoder.3} parent=5 // pred_fallthru
        _
      %p1161 = scmp.le.s32.totalorder 2, %s11
      // Predicated region
      $region139: #{double_layered_encoder.3} parent=5 // pred_check
        %p1162 = pneg %p1161
      $region140: #{double_layered_encoder.3} parent=5 // pred_check_branch
        %1164 = sbr.rel (%p1162) target = $region142
      $region141: #{double_layered_encoder.3} parent=5 // pred_region
        %s1165 = ssub.s32 %s11, 2
      $region142: #{double_layered_encoder.3} parent=5 // pred_fallthru
        _
    $region6: #{double_layered_encoder.3} parent=1 // loop_footer
      %s15 = sadd.s32 1, %s11
    $region7: #{double_layered_encoder.3} parent=1 // loop_footer_branch
      %10 = sbr.rel target = $region3
    $region8: #{double_layered_encoder.3} parent=1 // loop_exit
      _

</llo_original>
